<compile_context>
chip_gen: v6e
topology: v6e:2x2x1
jax: 0.10.0
libtpu: 0.0.40
codegen_flags: <defaults>
</compile_context>

<pallas_src>
import string

import jax
import jax.numpy as jnp
from jax.experimental import pallas as pl
from jax.experimental.pallas import tpu as pltpu

LANE = 128
SUBLANE = 8


def _pad_to(n, m):
    return ((n + m - 1) // m) * m


def rnn_seq_kernel(ids_ref, h0_ref, wih_ref, whh_ref, brnn_ref, wl_ref, bl_ref,
                   out_ref, hn_ref):
    """Whole-sequence fused RNN cell + Linear + LogSoftmax.

    h_t   = tanh(W_ih^T[id_t] + h_{t-1} @ W_hh^T + (b_ih + b_hh))
    out_t = log_softmax(h_t @ W_l^T + b_l)

    All weights are VMEM-resident for the full kernel; the hidden state lives
    in vregs across the (fully unrolled, static) time loop; hn is written once.
    """
    T = out_ref.shape[0]
    whh = whh_ref[...]                    # (H_PAD, H_PAD)
    wl = wl_ref[...]                      # (H_PAD, OUT_PAD)
    b_rnn = brnn_ref[...]                 # (1, H_PAD)   folded b_ih + b_hh
    b_l = bl_ref[...]                     # (1, OUT_PAD) padded lanes = -1e30
    h = h0_ref[...]                       # (B_PAD, H_PAD) carried in vregs

    for t in range(T):                    # static, small T -> full unroll
        # one-hot input  =>  x_t @ W_ih^T is just row id_t of W_ih^T
        x_row = wih_ref[pl.ds(ids_ref[t], 1), :]          # (1, H_PAD)
        pre = (jnp.dot(h, whh, preferred_element_type=jnp.float32)
               + (x_row + b_rnn))
        h = jnp.tanh(pre)
        logits = jnp.dot(h, wl, preferred_element_type=jnp.float32) + b_l
        m = jnp.max(logits, axis=-1, keepdims=True)
        shifted = logits - m
        lse = jnp.log(jnp.sum(jnp.exp(shifted), axis=-1, keepdims=True))
        out_ref[t] = (shifted - lse).astype(out_ref.dtype)

    hn_ref[...] = h.astype(hn_ref.dtype)  # single final store


def init_params(key, input_size, hidden_size, output_size):
    """PyTorch-layout params for nn.RNN(input,hidden) + nn.Linear(hidden,out)."""
    ks = jax.random.split(key, 6)
    bound = 1.0 / jnp.sqrt(hidden_size)
    u = lambda k, shape: jax.random.uniform(k, shape, jnp.float32, -bound, bound)
    return {
        "w_ih": u(ks[0], (hidden_size, input_size)),   # weight_ih_l0
        "w_hh": u(ks[1], (hidden_size, hidden_size)),  # weight_hh_l0
        "b_ih": u(ks[2], (hidden_size,)),              # bias_ih_l0
        "b_hh": u(ks[3], (hidden_size,)),              # bias_hh_l0
        "w_l":  u(ks[4], (output_size, hidden_size)),  # linear.weight
        "b_l":  u(ks[5], (output_size,)),              # linear.bias
    }


def prepare_params(params):
    """Transpose + pad weights ONCE (never per forward call)."""
    hidden_size, input_size = params["w_ih"].shape
    output_size = params["w_l"].shape[0]
    in_rows = _pad_to(input_size, SUBLANE)   # gather rows: sublane-pad only
    h_pad = _pad_to(hidden_size, LANE)
    out_pad = _pad_to(output_size, LANE)

    def pad2(a, r, c):
        return jnp.zeros((r, c), jnp.float32).at[:a.shape[0], :a.shape[1]].set(a)

    w_ih_t = pad2(params["w_ih"].T, in_rows, h_pad)    # (IN_ROWS, H_PAD)
    w_hh_t = pad2(params["w_hh"].T, h_pad, h_pad)      # (H_PAD,  H_PAD)
    w_l_t = pad2(params["w_l"].T, h_pad, out_pad)      # (H_PAD,  OUT_PAD)
    b_rnn = (jnp.zeros((1, h_pad), jnp.float32)
             .at[0, :hidden_size].set(params["b_ih"] + params["b_hh"]))
    # Padded logit lanes carry -1e30 so the 128-lane max / logsumexp are exact
    # for the real output_size lanes (exp underflows to 0 in f32).
    b_l = (jnp.full((1, out_pad), -1e30, jnp.float32)
           .at[0, :output_size].set(params["b_l"]))
    return {
        "w_ih_t": w_ih_t, "w_hh_t": w_hh_t, "w_l_t": w_l_t,
        "b_rnn": b_rnn, "b_l": b_l,
        "sizes": (input_size, hidden_size, output_size),
        "pads": (in_rows, h_pad, out_pad),
    }


def rnn_forward_seq(x_seq, hidden, prep):
    """Run a whole one-hot letter sequence through the fused kernel.

    x_seq  : (T, B=1, input_size) one-hot letters (lineToTensor layout)
    hidden : (num_layers=1, B, hidden_size)
    returns log_probs (T, B, output_size), hn (1, B, hidden_size)
    """
    input_size, hidden_size, output_size = prep["sizes"]
    _, h_pad, out_pad = prep["pads"]
    T, B, _ = x_seq.shape
    assert B == 1, "original module is batch=1"
    b_pad = SUBLANE

    # One-hot -> letter ids (exact for lineToTensor inputs; T int32s in SMEM).
    ids = jnp.argmax(x_seq[:, 0, :], axis=-1).astype(jnp.int32)       # (T,)
    h_p = (jnp.zeros((b_pad, h_pad), jnp.float32)
           .at[:B, :hidden_size].set(hidden[0]))

    vmem = pl.BlockSpec(memory_space=pltpu.MemorySpace.VMEM)
    smem = pl.BlockSpec(memory_space=pltpu.MemorySpace.SMEM)

    out_p, hn_p = pl.pallas_call(
        rnn_seq_kernel,
        out_shape=(jax.ShapeDtypeStruct((T, b_pad, out_pad), jnp.float32),
                   jax.ShapeDtypeStruct((b_pad, h_pad), jnp.float32)),
        in_specs=[smem,   # letter ids
                  vmem,   # h0
                  vmem,   # W_ih^T
                  vmem,   # W_hh^T
                  vmem,   # folded rnn bias
                  vmem,   # W_l^T
                  vmem],  # masked linear bias
        out_specs=(vmem, vmem),
    )(ids, h_p, prep["w_ih_t"], prep["w_hh_t"], prep["b_rnn"],
      prep["w_l_t"], prep["b_l"])

    log_probs = out_p[:, :B, :output_size]
    hn = hn_p[:B, :hidden_size].reshape(1, B, hidden_size)
    return log_probs, hn


def rnn_forward(input1, hidden, prep):
    """Mirror of RNN.forward(input1, hidden): one time step (seq=1)."""
    return rnn_forward_seq(input1[None, ...], hidden, prep)


def _reference_seq(x_seq, hidden, params):
    def step(h, x):
        h_new = jnp.tanh(x @ params["w_ih"].T + params["b_ih"]
                         + h @ params["w_hh"].T + params["b_hh"])
        logits = h_new @ params["w_l"].T + params["b_l"]
        return h_new, jax.nn.log_softmax(logits, axis=-1)
    h_final, lps = jax.lax.scan(step, hidden[0], x_seq)
    return lps, h_final[None]


if __name__ == "__main__":
    all_letters = string.ascii_letters + '.,;'
    input_size = len(all_letters)   # 55
    hidden_size = 64                # n_hidden
    output_size = 18                # name-origin categories
    num_layers = 1
    T = 8                           # letters in the "name"
    B = 1                           # matches the original batch=1 usage

    key = jax.random.PRNGKey(0)
    kp, kx = jax.random.split(key)
    params = init_params(kp, input_size, hidden_size, output_size)
    prep = prepare_params(params)   # pad/transpose ONCE

    # One-hot letter sequence, like lineToTensor: (T, B, n_letters)
    letter_ids = jax.random.randint(kx, (T, B), 0, input_size)
    x_seq = jax.nn.one_hot(letter_ids, input_size, dtype=jnp.float32)
    hidden0 = jnp.zeros((num_layers, B, hidden_size), jnp.float32)  # initHidden()

    # Fused whole-sequence forward: ONE pallas_call, no time grid.
    log_probs, hn = rnn_forward_seq(x_seq, hidden0, prep)
    jax.block_until_ready((log_probs, hn))

    # Pure-JAX reference of the same math.
    lp_ref, hn_ref = _reference_seq(x_seq, hidden0, params)
    assert log_probs.shape == (T, B, output_size)
    assert hn.shape == (1, B, hidden_size)
    assert jnp.allclose(log_probs, lp_ref, atol=1e-5)
    assert jnp.allclose(hn, hn_ref, atol=1e-5)

    # Single-step path (exact mirror of RNN.forward) also matches.
    lp1, hn1 = rnn_forward(x_seq[0], hidden0, prep)
    jax.block_until_ready((lp1, hn1))
    assert lp1.shape == (1, B, output_size)
    assert jnp.allclose(lp1[0], lp_ref[0], atol=1e-5)

    print("KERNEL_OK")
</pallas_src>

<mosaic_0001>
module attributes {stable_mosaic.version = 11 : i64} {
  func.func @rnn_seq_kernel(%arg0: memref<8xi32, #tpu.memory_space<smem>>, %arg1: memref<8x128xf32, #tpu.memory_space<vmem>>, %arg2: memref<56x128xf32, #tpu.memory_space<vmem>>, %arg3: memref<128x128xf32, #tpu.memory_space<vmem>>, %arg4: memref<1x128xf32, #tpu.memory_space<vmem>>, %arg5: memref<128x128xf32, #tpu.memory_space<vmem>>, %arg6: memref<1x128xf32, #tpu.memory_space<vmem>>, %arg7: memref<8x8x128xf32, #tpu.memory_space<vmem>>, %arg8: memref<8x128xf32, #tpu.memory_space<vmem>>) attributes {dimension_semantics = [], scalar_prefetch = 0 : i64, scratch_operands = 0 : i64, tpu.core_type = #tpu.core_type<tc>} {
    %c0 = arith.constant 0 : index
    %c0_0 = arith.constant 0 : index
    %0 = vector.load %arg3[%c0, %c0_0] : memref<128x128xf32, #tpu.memory_space<vmem>>, vector<128x128xf32>
    %c0_1 = arith.constant 0 : index
    %c0_2 = arith.constant 0 : index
    %1 = vector.load %arg5[%c0_1, %c0_2] : memref<128x128xf32, #tpu.memory_space<vmem>>, vector<128x128xf32>
    %c0_3 = arith.constant 0 : index
    %c0_4 = arith.constant 0 : index
    %2 = vector.load %arg4[%c0_3, %c0_4] : memref<1x128xf32, #tpu.memory_space<vmem>>, vector<1x128xf32>
    %c0_5 = arith.constant 0 : index
    %c0_6 = arith.constant 0 : index
    %3 = vector.load %arg6[%c0_5, %c0_6] : memref<1x128xf32, #tpu.memory_space<vmem>>, vector<1x128xf32>
    %c0_7 = arith.constant 0 : index
    %c0_8 = arith.constant 0 : index
    %4 = vector.load %arg1[%c0_7, %c0_8] : memref<8x128xf32, #tpu.memory_space<vmem>>, vector<8x128xf32>
    %c0_9 = arith.constant 0 : index
    %5 = memref.load %arg0[%c0_9] : memref<8xi32, #tpu.memory_space<smem>>
    %6 = arith.index_cast %5 : i32 to index
    %c0_10 = arith.constant 0 : index
    %7 = vector.load %arg2[%6, %c0_10] : memref<56x128xf32, #tpu.memory_space<vmem>>, vector<1x128xf32>
    %cst = arith.constant dense<0.000000e+00> : vector<8x128xf32>
    %8 = tpu.matmul %4, %0, %cst {dimension_numbers = #tpu.dot_dimension_numbers<[1], [0], [0], [1], [0, 0, 1, 1], [], []>} : vector<8x128xf32>, vector<128x128xf32>, vector<8x128xf32> -> vector<8x128xf32>
    %9 = arith.addf %7, %2 : vector<1x128xf32>
    %10 = vector.broadcast %9 : vector<1x128xf32> to vector<8x128xf32>
    %11 = arith.addf %8, %10 : vector<8x128xf32>
    %12 = math.tanh %11 : vector<8x128xf32>
    %cst_11 = arith.constant dense<0.000000e+00> : vector<8x128xf32>
    %13 = tpu.matmul %12, %1, %cst_11 {dimension_numbers = #tpu.dot_dimension_numbers<[1], [0], [0], [1], [0, 0, 1, 1], [], []>} : vector<8x128xf32>, vector<128x128xf32>, vector<8x128xf32> -> vector<8x128xf32>
    %14 = vector.broadcast %3 : vector<1x128xf32> to vector<8x128xf32>
    %15 = arith.addf %13, %14 : vector<8x128xf32>
    %cst_12 = arith.constant dense<0xFF800000> : vector<8xf32>
    %16 = vector.multi_reduction <maximumf>, %15, %cst_12 [1] : vector<8x128xf32> to vector<8xf32>
    %17 = vector.shape_cast %16 : vector<8xf32> to vector<8x1xf32>
    %18 = vector.broadcast %17 : vector<8x1xf32> to vector<8x128xf32>
    %19 = arith.subf %15, %18 : vector<8x128xf32>
    %20 = math.exp %19 : vector<8x128xf32>
    %cst_13 = arith.constant dense<0.000000e+00> : vector<8xf32>
    %21 = vector.multi_reduction <add>, %20, %cst_13 [1] : vector<8x128xf32> to vector<8xf32>
    %22 = vector.shape_cast %21 : vector<8xf32> to vector<8x1xf32>
    %23 = math.log %22 : vector<8x1xf32>
    %24 = vector.broadcast %23 : vector<8x1xf32> to vector<8x128xf32>
    %25 = arith.subf %19, %24 : vector<8x128xf32>
    %c0_14 = arith.constant 0 : index
    %c0_15 = arith.constant 0 : index
    %c0_16 = arith.constant 0 : index
    %26 = vector.load %arg7[%c0_14, %c0_15, %c0_16] : memref<8x8x128xf32, #tpu.memory_space<vmem>>, vector<1x8x128xf32>
    %27 = vector.shape_cast %26 : vector<1x8x128xf32> to vector<8x128xf32>
    %28 = vector.shape_cast %25 : vector<8x128xf32> to vector<1x8x128xf32>
    tpu.vector_store %arg7[%c0_14, %c0_15, %c0_16], %28 {strides = array<i32>} : memref<8x8x128xf32, #tpu.memory_space<vmem>>, vector<1x8x128xf32>,
    %c1 = arith.constant 1 : index
    %29 = memref.load %arg0[%c1] : memref<8xi32, #tpu.memory_space<smem>>
    %30 = arith.index_cast %29 : i32 to index
    %c0_17 = arith.constant 0 : index
    %31 = vector.load %arg2[%30, %c0_17] : memref<56x128xf32, #tpu.memory_space<vmem>>, vector<1x128xf32>
    %cst_18 = arith.constant dense<0.000000e+00> : vector<8x128xf32>
    %32 = tpu.matmul %12, %0, %cst_18 {dimension_numbers = #tpu.dot_dimension_numbers<[1], [0], [0], [1], [0, 0, 1, 1], [], []>} : vector<8x128xf32>, vector<128x128xf32>, vector<8x128xf32> -> vector<8x128xf32>
    %33 = arith.addf %31, %2 : vector<1x128xf32>
    %34 = vector.broadcast %33 : vector<1x128xf32> to vector<8x128xf32>
    %35 = arith.addf %32, %34 : vector<8x128xf32>
    %36 = math.tanh %35 : vector<8x128xf32>
    %cst_19 = arith.constant dense<0.000000e+00> : vector<8x128xf32>
    %37 = tpu.matmul %36, %1, %cst_19 {dimension_numbers = #tpu.dot_dimension_numbers<[1], [0], [0], [1], [0, 0, 1, 1], [], []>} : vector<8x128xf32>, vector<128x128xf32>, vector<8x128xf32> -> vector<8x128xf32>
    %38 = vector.broadcast %3 : vector<1x128xf32> to vector<8x128xf32>
    %39 = arith.addf %37, %38 : vector<8x128xf32>
    %cst_20 = arith.constant dense<0xFF800000> : vector<8xf32>
    %40 = vector.multi_reduction <maximumf>, %39, %cst_20 [1] : vector<8x128xf32> to vector<8xf32>
    %41 = vector.shape_cast %40 : vector<8xf32> to vector<8x1xf32>
    %42 = vector.broadcast %41 : vector<8x1xf32> to vector<8x128xf32>
    %43 = arith.subf %39, %42 : vector<8x128xf32>
    %44 = math.exp %43 : vector<8x128xf32>
    %cst_21 = arith.constant dense<0.000000e+00> : vector<8xf32>
    %45 = vector.multi_reduction <add>, %44, %cst_21 [1] : vector<8x128xf32> to vector<8xf32>
    %46 = vector.shape_cast %45 : vector<8xf32> to vector<8x1xf32>
    %47 = math.log %46 : vector<8x1xf32>
    %48 = vector.broadcast %47 : vector<8x1xf32> to vector<8x128xf32>
    %49 = arith.subf %43, %48 : vector<8x128xf32>
    %c1_22 = arith.constant 1 : index
    %c0_23 = arith.constant 0 : index
    %c0_24 = arith.constant 0 : index
    %50 = vector.load %arg7[%c1_22, %c0_23, %c0_24] : memref<8x8x128xf32, #tpu.memory_space<vmem>>, vector<1x8x128xf32>
    %51 = vector.shape_cast %50 : vector<1x8x128xf32> to vector<8x128xf32>
    %52 = vector.shape_cast %49 : vector<8x128xf32> to vector<1x8x128xf32>
    tpu.vector_store %arg7[%c1_22, %c0_23, %c0_24], %52 {strides = array<i32>} : memref<8x8x128xf32, #tpu.memory_space<vmem>>, vector<1x8x128xf32>,
    %c2 = arith.constant 2 : index
    %53 = memref.load %arg0[%c2] : memref<8xi32, #tpu.memory_space<smem>>
    %54 = arith.index_cast %53 : i32 to index
    %c0_25 = arith.constant 0 : index
    %55 = vector.load %arg2[%54, %c0_25] : memref<56x128xf32, #tpu.memory_space<vmem>>, vector<1x128xf32>
    %cst_26 = arith.constant dense<0.000000e+00> : vector<8x128xf32>
    %56 = tpu.matmul %36, %0, %cst_26 {dimension_numbers = #tpu.dot_dimension_numbers<[1], [0], [0], [1], [0, 0, 1, 1], [], []>} : vector<8x128xf32>, vector<128x128xf32>, vector<8x128xf32> -> vector<8x128xf32>
    %57 = arith.addf %55, %2 : vector<1x128xf32>
    %58 = vector.broadcast %57 : vector<1x128xf32> to vector<8x128xf32>
    %59 = arith.addf %56, %58 : vector<8x128xf32>
    %60 = math.tanh %59 : vector<8x128xf32>
    %cst_27 = arith.constant dense<0.000000e+00> : vector<8x128xf32>
    %61 = tpu.matmul %60, %1, %cst_27 {dimension_numbers = #tpu.dot_dimension_numbers<[1], [0], [0], [1], [0, 0, 1, 1], [], []>} : vector<8x128xf32>, vector<128x128xf32>, vector<8x128xf32> -> vector<8x128xf32>
    %62 = vector.broadcast %3 : vector<1x128xf32> to vector<8x128xf32>
    %63 = arith.addf %61, %62 : vector<8x128xf32>
    %cst_28 = arith.constant dense<0xFF800000> : vector<8xf32>
    %64 = vector.multi_reduction <maximumf>, %63, %cst_28 [1] : vector<8x128xf32> to vector<8xf32>
    %65 = vector.shape_cast %64 : vector<8xf32> to vector<8x1xf32>
    %66 = vector.broadcast %65 : vector<8x1xf32> to vector<8x128xf32>
    %67 = arith.subf %63, %66 : vector<8x128xf32>
    %68 = math.exp %67 : vector<8x128xf32>
    %cst_29 = arith.constant dense<0.000000e+00> : vector<8xf32>
    %69 = vector.multi_reduction <add>, %68, %cst_29 [1] : vector<8x128xf32> to vector<8xf32>
    %70 = vector.shape_cast %69 : vector<8xf32> to vector<8x1xf32>
    %71 = math.log %70 : vector<8x1xf32>
    %72 = vector.broadcast %71 : vector<8x1xf32> to vector<8x128xf32>
    %73 = arith.subf %67, %72 : vector<8x128xf32>
    %c2_30 = arith.constant 2 : index
    %c0_31 = arith.constant 0 : index
    %c0_32 = arith.constant 0 : index
    %74 = vector.load %arg7[%c2_30, %c0_31, %c0_32] : memref<8x8x128xf32, #tpu.memory_space<vmem>>, vector<1x8x128xf32>
    %75 = vector.shape_cast %74 : vector<1x8x128xf32> to vector<8x128xf32>
    %76 = vector.shape_cast %73 : vector<8x128xf32> to vector<1x8x128xf32>
    tpu.vector_store %arg7[%c2_30, %c0_31, %c0_32], %76 {strides = array<i32>} : memref<8x8x128xf32, #tpu.memory_space<vmem>>, vector<1x8x128xf32>,
    %c3 = arith.constant 3 : index
    %77 = memref.load %arg0[%c3] : memref<8xi32, #tpu.memory_space<smem>>
    %78 = arith.index_cast %77 : i32 to index
    %c0_33 = arith.constant 0 : index
    %79 = vector.load %arg2[%78, %c0_33] : memref<56x128xf32, #tpu.memory_space<vmem>>, vector<1x128xf32>
    %cst_34 = arith.constant dense<0.000000e+00> : vector<8x128xf32>
    %80 = tpu.matmul %60, %0, %cst_34 {dimension_numbers = #tpu.dot_dimension_numbers<[1], [0], [0], [1], [0, 0, 1, 1], [], []>} : vector<8x128xf32>, vector<128x128xf32>, vector<8x128xf32> -> vector<8x128xf32>
    %81 = arith.addf %79, %2 : vector<1x128xf32>
    %82 = vector.broadcast %81 : vector<1x128xf32> to vector<8x128xf32>
    %83 = arith.addf %80, %82 : vector<8x128xf32>
    %84 = math.tanh %83 : vector<8x128xf32>
    %cst_35 = arith.constant dense<0.000000e+00> : vector<8x128xf32>
    %85 = tpu.matmul %84, %1, %cst_35 {dimension_numbers = #tpu.dot_dimension_numbers<[1], [0], [0], [1], [0, 0, 1, 1], [], []>} : vector<8x128xf32>, vector<128x128xf32>, vector<8x128xf32> -> vector<8x128xf32>
    %86 = vector.broadcast %3 : vector<1x128xf32> to vector<8x128xf32>
    %87 = arith.addf %85, %86 : vector<8x128xf32>
    %cst_36 = arith.constant dense<0xFF800000> : vector<8xf32>
    %88 = vector.multi_reduction <maximumf>, %87, %cst_36 [1] : vector<8x128xf32> to vector<8xf32>
    %89 = vector.shape_cast %88 : vector<8xf32> to vector<8x1xf32>
    %90 = vector.broadcast %89 : vector<8x1xf32> to vector<8x128xf32>
    %91 = arith.subf %87, %90 : vector<8x128xf32>
    %92 = math.exp %91 : vector<8x128xf32>
    %cst_37 = arith.constant dense<0.000000e+00> : vector<8xf32>
    %93 = vector.multi_reduction <add>, %92, %cst_37 [1] : vector<8x128xf32> to vector<8xf32>
    %94 = vector.shape_cast %93 : vector<8xf32> to vector<8x1xf32>
    %95 = math.log %94 : vector<8x1xf32>
    %96 = vector.broadcast %95 : vector<8x1xf32> to vector<8x128xf32>
    %97 = arith.subf %91, %96 : vector<8x128xf32>
    %c3_38 = arith.constant 3 : index
    %c0_39 = arith.constant 0 : index
    %c0_40 = arith.constant 0 : index
    %98 = vector.load %arg7[%c3_38, %c0_39, %c0_40] : memref<8x8x128xf32, #tpu.memory_space<vmem>>, vector<1x8x128xf32>
    %99 = vector.shape_cast %98 : vector<1x8x128xf32> to vector<8x128xf32>
    %100 = vector.shape_cast %97 : vector<8x128xf32> to vector<1x8x128xf32>
    tpu.vector_store %arg7[%c3_38, %c0_39, %c0_40], %100 {strides = array<i32>} : memref<8x8x128xf32, #tpu.memory_space<vmem>>, vector<1x8x128xf32>,
    %c4 = arith.constant 4 : index
    %101 = memref.load %arg0[%c4] : memref<8xi32, #tpu.memory_space<smem>>
    %102 = arith.index_cast %101 : i32 to index
    %c0_41 = arith.constant 0 : index
    %103 = vector.load %arg2[%102, %c0_41] : memref<56x128xf32, #tpu.memory_space<vmem>>, vector<1x128xf32>
    %cst_42 = arith.constant dense<0.000000e+00> : vector<8x128xf32>
    %104 = tpu.matmul %84, %0, %cst_42 {dimension_numbers = #tpu.dot_dimension_numbers<[1], [0], [0], [1], [0, 0, 1, 1], [], []>} : vector<8x128xf32>, vector<128x128xf32>, vector<8x128xf32> -> vector<8x128xf32>
    %105 = arith.addf %103, %2 : vector<1x128xf32>
    %106 = vector.broadcast %105 : vector<1x128xf32> to vector<8x128xf32>
    %107 = arith.addf %104, %106 : vector<8x128xf32>
    %108 = math.tanh %107 : vector<8x128xf32>
    %cst_43 = arith.constant dense<0.000000e+00> : vector<8x128xf32>
    %109 = tpu.matmul %108, %1, %cst_43 {dimension_numbers = #tpu.dot_dimension_numbers<[1], [0], [0], [1], [0, 0, 1, 1], [], []>} : vector<8x128xf32>, vector<128x128xf32>, vector<8x128xf32> -> vector<8x128xf32>
    %110 = vector.broadcast %3 : vector<1x128xf32> to vector<8x128xf32>
    %111 = arith.addf %109, %110 : vector<8x128xf32>
    %cst_44 = arith.constant dense<0xFF800000> : vector<8xf32>
    %112 = vector.multi_reduction <maximumf>, %111, %cst_44 [1] : vector<8x128xf32> to vector<8xf32>
    %113 = vector.shape_cast %112 : vector<8xf32> to vector<8x1xf32>
    %114 = vector.broadcast %113 : vector<8x1xf32> to vector<8x128xf32>
    %115 = arith.subf %111, %114 : vector<8x128xf32>
    %116 = math.exp %115 : vector<8x128xf32>
    %cst_45 = arith.constant dense<0.000000e+00> : vector<8xf32>
    %117 = vector.multi_reduction <add>, %116, %cst_45 [1] : vector<8x128xf32> to vector<8xf32>
    %118 = vector.shape_cast %117 : vector<8xf32> to vector<8x1xf32>
    %119 = math.log %118 : vector<8x1xf32>
    %120 = vector.broadcast %119 : vector<8x1xf32> to vector<8x128xf32>
    %121 = arith.subf %115, %120 : vector<8x128xf32>
    %c4_46 = arith.constant 4 : index
    %c0_47 = arith.constant 0 : index
    %c0_48 = arith.constant 0 : index
    %122 = vector.load %arg7[%c4_46, %c0_47, %c0_48] : memref<8x8x128xf32, #tpu.memory_space<vmem>>, vector<1x8x128xf32>
    %123 = vector.shape_cast %122 : vector<1x8x128xf32> to vector<8x128xf32>
    %124 = vector.shape_cast %121 : vector<8x128xf32> to vector<1x8x128xf32>
    tpu.vector_store %arg7[%c4_46, %c0_47, %c0_48], %124 {strides = array<i32>} : memref<8x8x128xf32, #tpu.memory_space<vmem>>, vector<1x8x128xf32>,
    %c5 = arith.constant 5 : index
    %125 = memref.load %arg0[%c5] : memref<8xi32, #tpu.memory_space<smem>>
    %126 = arith.index_cast %125 : i32 to index
    %c0_49 = arith.constant 0 : index
    %127 = vector.load %arg2[%126, %c0_49] : memref<56x128xf32, #tpu.memory_space<vmem>>, vector<1x128xf32>
    %cst_50 = arith.constant dense<0.000000e+00> : vector<8x128xf32>
    %128 = tpu.matmul %108, %0, %cst_50 {dimension_numbers = #tpu.dot_dimension_numbers<[1], [0], [0], [1], [0, 0, 1, 1], [], []>} : vector<8x128xf32>, vector<128x128xf32>, vector<8x128xf32> -> vector<8x128xf32>
    %129 = arith.addf %127, %2 : vector<1x128xf32>
    %130 = vector.broadcast %129 : vector<1x128xf32> to vector<8x128xf32>
    %131 = arith.addf %128, %130 : vector<8x128xf32>
    %132 = math.tanh %131 : vector<8x128xf32>
    %cst_51 = arith.constant dense<0.000000e+00> : vector<8x128xf32>
    %133 = tpu.matmul %132, %1, %cst_51 {dimension_numbers = #tpu.dot_dimension_numbers<[1], [0], [0], [1], [0, 0, 1, 1], [], []>} : vector<8x128xf32>, vector<128x128xf32>, vector<8x128xf32> -> vector<8x128xf32>
    %134 = vector.broadcast %3 : vector<1x128xf32> to vector<8x128xf32>
    %135 = arith.addf %133, %134 : vector<8x128xf32>
    %cst_52 = arith.constant dense<0xFF800000> : vector<8xf32>
    %136 = vector.multi_reduction <maximumf>, %135, %cst_52 [1] : vector<8x128xf32> to vector<8xf32>
    %137 = vector.shape_cast %136 : vector<8xf32> to vector<8x1xf32>
    %138 = vector.broadcast %137 : vector<8x1xf32> to vector<8x128xf32>
    %139 = arith.subf %135, %138 : vector<8x128xf32>
    %140 = math.exp %139 : vector<8x128xf32>
    %cst_53 = arith.constant dense<0.000000e+00> : vector<8xf32>
    %141 = vector.multi_reduction <add>, %140, %cst_53 [1] : vector<8x128xf32> to vector<8xf32>
    %142 = vector.shape_cast %141 : vector<8xf32> to vector<8x1xf32>
    %143 = math.log %142 : vector<8x1xf32>
    %144 = vector.broadcast %143 : vector<8x1xf32> to vector<8x128xf32>
    %145 = arith.subf %139, %144 : vector<8x128xf32>
    %c5_54 = arith.constant 5 : index
    %c0_55 = arith.constant 0 : index
    %c0_56 = arith.constant 0 : index
    %146 = vector.load %arg7[%c5_54, %c0_55, %c0_56] : memref<8x8x128xf32, #tpu.memory_space<vmem>>, vector<1x8x128xf32>
    %147 = vector.shape_cast %146 : vector<1x8x128xf32> to vector<8x128xf32>
    %148 = vector.shape_cast %145 : vector<8x128xf32> to vector<1x8x128xf32>
    tpu.vector_store %arg7[%c5_54, %c0_55, %c0_56], %148 {strides = array<i32>} : memref<8x8x128xf32, #tpu.memory_space<vmem>>, vector<1x8x128xf32>,
    %c6 = arith.constant 6 : index
    %149 = memref.load %arg0[%c6] : memref<8xi32, #tpu.memory_space<smem>>
    %150 = arith.index_cast %149 : i32 to index
    %c0_57 = arith.constant 0 : index
    %151 = vector.load %arg2[%150, %c0_57] : memref<56x128xf32, #tpu.memory_space<vmem>>, vector<1x128xf32>
    %cst_58 = arith.constant dense<0.000000e+00> : vector<8x128xf32>
    %152 = tpu.matmul %132, %0, %cst_58 {dimension_numbers = #tpu.dot_dimension_numbers<[1], [0], [0], [1], [0, 0, 1, 1], [], []>} : vector<8x128xf32>, vector<128x128xf32>, vector<8x128xf32> -> vector<8x128xf32>
    %153 = arith.addf %151, %2 : vector<1x128xf32>
    %154 = vector.broadcast %153 : vector<1x128xf32> to vector<8x128xf32>
    %155 = arith.addf %152, %154 : vector<8x128xf32>
    %156 = math.tanh %155 : vector<8x128xf32>
    %cst_59 = arith.constant dense<0.000000e+00> : vector<8x128xf32>
    %157 = tpu.matmul %156, %1, %cst_59 {dimension_numbers = #tpu.dot_dimension_numbers<[1], [0], [0], [1], [0, 0, 1, 1], [], []>} : vector<8x128xf32>, vector<128x128xf32>, vector<8x128xf32> -> vector<8x128xf32>
    %158 = vector.broadcast %3 : vector<1x128xf32> to vector<8x128xf32>
    %159 = arith.addf %157, %158 : vector<8x128xf32>
    %cst_60 = arith.constant dense<0xFF800000> : vector<8xf32>
    %160 = vector.multi_reduction <maximumf>, %159, %cst_60 [1] : vector<8x128xf32> to vector<8xf32>
    %161 = vector.shape_cast %160 : vector<8xf32> to vector<8x1xf32>
    %162 = vector.broadcast %161 : vector<8x1xf32> to vector<8x128xf32>
    %163 = arith.subf %159, %162 : vector<8x128xf32>
    %164 = math.exp %163 : vector<8x128xf32>
    %cst_61 = arith.constant dense<0.000000e+00> : vector<8xf32>
    %165 = vector.multi_reduction <add>, %164, %cst_61 [1] : vector<8x128xf32> to vector<8xf32>
    %166 = vector.shape_cast %165 : vector<8xf32> to vector<8x1xf32>
    %167 = math.log %166 : vector<8x1xf32>
    %168 = vector.broadcast %167 : vector<8x1xf32> to vector<8x128xf32>
    %169 = arith.subf %163, %168 : vector<8x128xf32>
    %c6_62 = arith.constant 6 : index
    %c0_63 = arith.constant 0 : index
    %c0_64 = arith.constant 0 : index
    %170 = vector.load %arg7[%c6_62, %c0_63, %c0_64] : memref<8x8x128xf32, #tpu.memory_space<vmem>>, vector<1x8x128xf32>
    %171 = vector.shape_cast %170 : vector<1x8x128xf32> to vector<8x128xf32>
    %172 = vector.shape_cast %169 : vector<8x128xf32> to vector<1x8x128xf32>
    tpu.vector_store %arg7[%c6_62, %c0_63, %c0_64], %172 {strides = array<i32>} : memref<8x8x128xf32, #tpu.memory_space<vmem>>, vector<1x8x128xf32>,
    %c7 = arith.constant 7 : index
    %173 = memref.load %arg0[%c7] : memref<8xi32, #tpu.memory_space<smem>>
    %174 = arith.index_cast %173 : i32 to index
    %c0_65 = arith.constant 0 : index
    %175 = vector.load %arg2[%174, %c0_65] : memref<56x128xf32, #tpu.memory_space<vmem>>, vector<1x128xf32>
    %cst_66 = arith.constant dense<0.000000e+00> : vector<8x128xf32>
    %176 = tpu.matmul %156, %0, %cst_66 {dimension_numbers = #tpu.dot_dimension_numbers<[1], [0], [0], [1], [0, 0, 1, 1], [], []>} : vector<8x128xf32>, vector<128x128xf32>, vector<8x128xf32> -> vector<8x128xf32>
    %177 = arith.addf %175, %2 : vector<1x128xf32>
    %178 = vector.broadcast %177 : vector<1x128xf32> to vector<8x128xf32>
    %179 = arith.addf %176, %178 : vector<8x128xf32>
    %180 = math.tanh %179 : vector<8x128xf32>
    %cst_67 = arith.constant dense<0.000000e+00> : vector<8x128xf32>
    %181 = tpu.matmul %180, %1, %cst_67 {dimension_numbers = #tpu.dot_dimension_numbers<[1], [0], [0], [1], [0, 0, 1, 1], [], []>} : vector<8x128xf32>, vector<128x128xf32>, vector<8x128xf32> -> vector<8x128xf32>
    %182 = vector.broadcast %3 : vector<1x128xf32> to vector<8x128xf32>
    %183 = arith.addf %181, %182 : vector<8x128xf32>
    %cst_68 = arith.constant dense<0xFF800000> : vector<8xf32>
    %184 = vector.multi_reduction <maximumf>, %183, %cst_68 [1] : vector<8x128xf32> to vector<8xf32>
    %185 = vector.shape_cast %184 : vector<8xf32> to vector<8x1xf32>
    %186 = vector.broadcast %185 : vector<8x1xf32> to vector<8x128xf32>
    %187 = arith.subf %183, %186 : vector<8x128xf32>
    %188 = math.exp %187 : vector<8x128xf32>
    %cst_69 = arith.constant dense<0.000000e+00> : vector<8xf32>
    %189 = vector.multi_reduction <add>, %188, %cst_69 [1] : vector<8x128xf32> to vector<8xf32>
    %190 = vector.shape_cast %189 : vector<8xf32> to vector<8x1xf32>
    %191 = math.log %190 : vector<8x1xf32>
    %192 = vector.broadcast %191 : vector<8x1xf32> to vector<8x128xf32>
    %193 = arith.subf %187, %192 : vector<8x128xf32>
    %c7_70 = arith.constant 7 : index
    %c0_71 = arith.constant 0 : index
    %c0_72 = arith.constant 0 : index
    %194 = vector.load %arg7[%c7_70, %c0_71, %c0_72] : memref<8x8x128xf32, #tpu.memory_space<vmem>>, vector<1x8x128xf32>
    %195 = vector.shape_cast %194 : vector<1x8x128xf32> to vector<8x128xf32>
    %196 = vector.shape_cast %193 : vector<8x128xf32> to vector<1x8x128xf32>
    tpu.vector_store %arg7[%c7_70, %c0_71, %c0_72], %196 {strides = array<i32>} : memref<8x8x128xf32, #tpu.memory_space<vmem>>, vector<1x8x128xf32>,
    %c0_73 = arith.constant 0 : index
    %c0_74 = arith.constant 0 : index
    %197 = vector.load %arg8[%c0_73, %c0_74] : memref<8x128xf32, #tpu.memory_space<vmem>>, vector<8x128xf32>
    tpu.vector_store %arg8[%c0_73, %c0_74], %180 {strides = array<i32>} : memref<8x128xf32, #tpu.memory_space<vmem>>, vector<8x128xf32>,
    return
  }
}

</mosaic_0001>

<llo_original>
// kernel: tpu_custom_call.1
$region0: #{tpu_custom_call.1}
  #allocation0 [shape = 'u32[]', space=smem, size = 0x4, offset = 0x4, fixed_abs, tag = 'smem constant byte address 0x4 - core index']
  #allocation1 [shape = 'u32[144,128]{1,0:T(1,128)}', space=vmem, size = 0x12000, scoped, tag = 'internal scratch']
  %s0 = inlined_call_operand.hbm [shape: s32[8], index: 0, kind: input, shape index: {}]
  %s1 = inlined_call_operand.hbm [shape: f32[8,128], index: 1, kind: input, shape index: {}]
  %s2 = inlined_call_operand.hbm [shape: f32[56,128], index: 2, kind: input, shape index: {}]
  %s3 = inlined_call_operand.hbm [shape: f32[128,128], index: 3, kind: input, shape index: {}]
  %s4 = inlined_call_operand.vmem [shape: f32[1,128], index: 4, kind: input, shape index: {}]
  %s5 = inlined_call_operand.hbm [shape: f32[128,128], index: 5, kind: input, shape index: {}]
  %s6 = inlined_call_operand.vmem [shape: f32[1,128], index: 6, kind: input, shape index: {}]
  %s7 = inlined_call_operand.hbm [shape: f32[8,8,128], index: 7, kind: output, shape index: {0}]
  %s8 = inlined_call_operand.hbm [shape: f32[8,128], index: 8, kind: output, shape index: {1}]
  %9 = xla_tuple %s7, %s8
  %s10 = sld [smem:[#allocation0]]
  $region66: #{tpu_custom_call.1} parent=0
    _
  %s12 = ssub.s32 1, %s10
  %s13 = scalar_select 0, %s12, %s10
  $region1: #{tpu_custom_call.1} parent=0
    #allocation2 [shape = 'u8[512]{0}', space=smem, size = 0x200, scoped, tag = 'input window, operand 0, single buffered']
    #allocation3 [shape = 's32[1]{0}', space=sflag, size = 0x4, scoped, tag = 'scoped memory for tpu_custom_call.1']
    #allocation4 [shape = 's32[1]{0}', space=sflag, size = 0x4, scoped, tag = 'scoped memory for tpu_custom_call.1']
    #allocation5 [shape = 's32[1]{0}', space=sflag, size = 0x4, scoped, tag = 'scoped memory for tpu_custom_call.1']
    #allocation6 [shape = 'u8[4096]{0}', space=vmem, size = 0x1000, scoped, tag = 'input window, operand 1, single buffered']
    #allocation7 [shape = 'u8[28672]{0}', space=vmem, size = 0x7000, scoped, tag = 'input window, operand 2, single buffered']
    #allocation8 [shape = 's32[1]{0}', space=sflag, size = 0x4, scoped, tag = 'scoped memory for tpu_custom_call.1']
    #allocation9 [shape = 'u8[65536]{0}', space=vmem, size = 0x10000, scoped, tag = 'input window, operand 3, single buffered']
    #allocation10 [shape = 'u8[65536]{0}', space=vmem, size = 0x10000, scoped, tag = 'input window, operand 5, single buffered']
    #allocation11 [shape = 's32[1]{0}', space=sflag, size = 0x4, scoped, tag = 'scoped memory for tpu_custom_call.1']
    #allocation12 [shape = 'u8[32768]{0}', space=vmem, size = 0x8000, scoped, tag = 'output window, operand 0, single buffered']
    #allocation13 [shape = 'u8[4096]{0}', space=vmem, size = 0x1000, scoped, tag = 'output window, operand 1, single buffered']
    #allocation14 [shape = 's32[1]{0}', space=sflag, size = 0x4, scoped, tag = 'scoped memory for tpu_custom_call.1']
    %14 = vsyncpa [#allocation5], 0
    %15 = vsyncpa [#allocation3], 0
    %16 = vsyncpa [#allocation8], 0
    %17 = vsyncpa [#allocation11], 0
    %18 = vsyncpa [#allocation4], 0
    %19 = vsyncpa [#allocation14], 0
    // Predicated region
    $region2: #{tpu_custom_call.1} parent=1 // pred_check
      _
    $region3: #{tpu_custom_call.1} parent=1 // pred_check_branch
      %21 = sbr.rel (0) target = $region5
    $region4: #{tpu_custom_call.1} parent=1 // pred_region
      %s23 = ssub.s32 16, 16
      %24 = vsyncadd [#allocation5], %s23
      %27 = dma.hbm_to_smem %s0, 16, [#allocation2], [#allocation5]
    $region5: #{tpu_custom_call.1} parent=1 // pred_fallthru
      _
    // Predicated region
    $region6: #{tpu_custom_call.1} parent=1 // pred_check
      _
    $region7: #{tpu_custom_call.1} parent=1 // pred_check_branch
      %29 = sbr.rel (0) target = $region9
    $region8: #{tpu_custom_call.1} parent=1 // pred_region
      %s31 = ssub.s32 128, 128
      %32 = vsyncadd [#allocation3], %s31
      %s34 = sshll.u32 [#allocation6], 4
      %s35 = int_to_ptr.vmem [resolvable:$true] %s34
      %37 = dma.hbm_to_vmem [thread:$0]  %s1, 128, %s35, [#allocation3]
    $region9: #{tpu_custom_call.1} parent=1 // pred_fallthru
      _
    // Predicated region
    $region10: #{tpu_custom_call.1} parent=1 // pred_check
      _
    $region11: #{tpu_custom_call.1} parent=1 // pred_check_branch
      %39 = sbr.rel (0) target = $region13
    $region12: #{tpu_custom_call.1} parent=1 // pred_region
      %s41 = ssub.s32 896, 896
      %42 = vsyncadd [#allocation8], %s41
      %s43 = sshll.u32 [#allocation7], 4
      %s44 = int_to_ptr.vmem [resolvable:$true] %s43
      %49 = dma.hbm_to_vmem [thread:$0]  %s2, 896, %s44, [#allocation8], 128, 128, 8
    $region13: #{tpu_custom_call.1} parent=1 // pred_fallthru
      _
    // Predicated region
    $region14: #{tpu_custom_call.1} parent=1 // pred_check
      _
    $region15: #{tpu_custom_call.1} parent=1 // pred_check_branch
      %51 = sbr.rel (0) target = $region17
    $region16: #{tpu_custom_call.1} parent=1 // pred_region
      %s53 = ssub.s32 2048, 2048
      %54 = vsyncadd [#allocation8], %s53
      %s55 = sshll.u32 [#allocation9], 4
      %s56 = int_to_ptr.vmem [resolvable:$true] %s55
      %61 = dma.hbm_to_vmem [thread:$0]  %s3, 2048, %s56, [#allocation8], 128, 128, 8
    $region17: #{tpu_custom_call.1} parent=1 // pred_fallthru
      _
    // Predicated region
    $region18: #{tpu_custom_call.1} parent=1 // pred_check
      _
    $region19: #{tpu_custom_call.1} parent=1 // pred_check_branch
      %63 = sbr.rel (0) target = $region21
    $region20: #{tpu_custom_call.1} parent=1 // pred_region
      _
    $region21: #{tpu_custom_call.1} parent=1 // pred_fallthru
      _
    // Predicated region
    $region22: #{tpu_custom_call.1} parent=1 // pred_check
      _
    $region23: #{tpu_custom_call.1} parent=1 // pred_check_branch
      %65 = sbr.rel (0) target = $region25
    $region24: #{tpu_custom_call.1} parent=1 // pred_region
      %s67 = ssub.s32 2048, 2048
      %68 = vsyncadd [#allocation11], %s67
      %s69 = sshll.u32 [#allocation10], 4
      %s70 = int_to_ptr.vmem [resolvable:$true] %s69
      %75 = dma.hbm_to_vmem [thread:$0]  %s5, 2048, %s70, [#allocation11], 128, 128, 8
    $region25: #{tpu_custom_call.1} parent=1 // pred_fallthru
      _
    // Predicated region
    $region26: #{tpu_custom_call.1} parent=1 // pred_check
      _
    $region27: #{tpu_custom_call.1} parent=1 // pred_check_branch
      %77 = sbr.rel (0) target = $region29
    $region28: #{tpu_custom_call.1} parent=1 // pred_region
      _
    $region29: #{tpu_custom_call.1} parent=1 // pred_fallthru
      _
    // Predicated region
    $region30: #{tpu_custom_call.1} parent=1 // pred_check
      _
    $region31: #{tpu_custom_call.1} parent=1 // pred_check_branch
      %79 = sbr.rel (0) target = $region33
    $region32: #{tpu_custom_call.1} parent=1 // pred_region
      %80 = dma.done [#allocation5], 16
    $region33: #{tpu_custom_call.1} parent=1 // pred_fallthru
      _
    // Predicated region
    $region34: #{tpu_custom_call.1} parent=1 // pred_check
      _
    $region35: #{tpu_custom_call.1} parent=1 // pred_check_branch
      %82 = sbr.rel (0) target = $region37
    $region36: #{tpu_custom_call.1} parent=1 // pred_region
      %83 = dma.done [#allocation3], 128
    $region37: #{tpu_custom_call.1} parent=1 // pred_fallthru
      _
    // Predicated region
    $region38: #{tpu_custom_call.1} parent=1 // pred_check
      _
    $region39: #{tpu_custom_call.1} parent=1 // pred_check_branch
      %85 = sbr.rel (0) target = $region41
    $region40: #{tpu_custom_call.1} parent=1 // pred_region
      %86 = dma.done [#allocation8], 896
    $region41: #{tpu_custom_call.1} parent=1 // pred_fallthru
      _
    // Predicated region
    $region42: #{tpu_custom_call.1} parent=1 // pred_check
      _
    $region43: #{tpu_custom_call.1} parent=1 // pred_check_branch
      %88 = sbr.rel (0) target = $region45
    $region44: #{tpu_custom_call.1} parent=1 // pred_region
      %89 = dma.done [#allocation8], 2048
    $region45: #{tpu_custom_call.1} parent=1 // pred_fallthru
      _
    // Predicated region
    $region46: #{tpu_custom_call.1} parent=1 // pred_check
      _
    $region47: #{tpu_custom_call.1} parent=1 // pred_check_branch
      %91 = sbr.rel (0) target = $region49
    $region48: #{tpu_custom_call.1} parent=1 // pred_region
      %92 = dma.done [#allocation11], 2048
    $region49: #{tpu_custom_call.1} parent=1 // pred_fallthru
      _
    %93 = sfence
    %v94 = vld [vmem:[#allocation9] sm:$0xff]
    %v95 = vld [vmem:[#allocation9 + $0x8] sm:$0xff]
    %v96 = vld [vmem:[#allocation9 + $0x10] sm:$0xff]
    %v97 = vld [vmem:[#allocation9 + $0x18] sm:$0xff]
    %v98 = vld [vmem:[#allocation9 + $0x20] sm:$0xff]
    %v99 = vld [vmem:[#allocation9 + $0x28] sm:$0xff]
    %v100 = vld [vmem:[#allocation9 + $0x30] sm:$0xff]
    %v101 = vld [vmem:[#allocation9 + $0x38] sm:$0xff]
    %v102 = vld [vmem:[#allocation9 + $0x40] sm:$0xff]
    %v103 = vld [vmem:[#allocation9 + $0x48] sm:$0xff]
    %v104 = vld [vmem:[#allocation9 + $0x50] sm:$0xff]
    %v105 = vld [vmem:[#allocation9 + $0x58] sm:$0xff]
    %v106 = vld [vmem:[#allocation9 + $0x60] sm:$0xff]
    %v107 = vld [vmem:[#allocation9 + $0x68] sm:$0xff]
    %v108 = vld [vmem:[#allocation9 + $0x70] sm:$0xff]
    %v109 = vld [vmem:[#allocation9 + $0x78] sm:$0xff]
    %v110 = vld [vmem:[#allocation10] sm:$0xff]
    %v111 = vld [vmem:[#allocation10 + $0x8] sm:$0xff]
    %v112 = vld [vmem:[#allocation10 + $0x10] sm:$0xff]
    %v113 = vld [vmem:[#allocation10 + $0x18] sm:$0xff]
    %v114 = vld [vmem:[#allocation10 + $0x20] sm:$0xff]
    %v115 = vld [vmem:[#allocation10 + $0x28] sm:$0xff]
    %v116 = vld [vmem:[#allocation10 + $0x30] sm:$0xff]
    %v117 = vld [vmem:[#allocation10 + $0x38] sm:$0xff]
    %v118 = vld [vmem:[#allocation10 + $0x40] sm:$0xff]
    %v119 = vld [vmem:[#allocation10 + $0x48] sm:$0xff]
    %v120 = vld [vmem:[#allocation10 + $0x50] sm:$0xff]
    %v121 = vld [vmem:[#allocation10 + $0x58] sm:$0xff]
    %v122 = vld [vmem:[#allocation10 + $0x60] sm:$0xff]
    %v123 = vld [vmem:[#allocation10 + $0x68] sm:$0xff]
    %v124 = vld [vmem:[#allocation10 + $0x70] sm:$0xff]
    %v125 = vld [vmem:[#allocation10 + $0x78] sm:$0xff]
    %v126 = vld [vmem:[%s4] sm:$0x1]
    %v127 = vld [vmem:[%s6] sm:$0x1]
    %v128 = vld [vmem:[#allocation6] sm:$0xff]
    %s129 = sld [smem:[#allocation2]]
    %s130 = scalar_lea.vmem [#allocation7], %s129
    %v131 = vld [vmem:[%s130] sm:$0x1]
    %v132 = vadd.f32 %v131, %v126
    %v133 = vlaneseq
    %v134 = vshrl.u32 %v133, 7
    %v135 = vsub.s32 0, %v134
    %v136 = vrot.slane %v132, %v135
    %137 = vmatprep.subr.mxu0 0.0
    %138 = vmatpush1.msra.mxu0 %v109
    %139 = vmatprep.subr.mxu0 0.0
    %140 = vmatpush1.msra.mxu0 %v108
    %141 = vmatprep.subr.mxu0 0.0
    %142 = vmatpush1.msra.mxu0 %v107
    %143 = vmatprep.subr.mxu0 0.0
    %144 = vmatpush1.msra.mxu0 %v106
    %145 = vmatprep.subr.mxu0 0.0
    %146 = vmatpush1.msra.mxu0 %v105
    %147 = vmatprep.subr.mxu0 0.0
    %148 = vmatpush1.msra.mxu0 %v104
    %149 = vmatprep.subr.mxu0 0.0
    %150 = vmatpush1.msra.mxu0 %v103
    %151 = vmatprep.subr.mxu0 0.0
    %152 = vmatpush1.msra.mxu0 %v102
    %153 = vmatprep.subr.mxu0 0.0
    %154 = vmatpush1.msra.mxu0 %v101
    %155 = vmatprep.subr.mxu0 0.0
    %156 = vmatpush1.msra.mxu0 %v100
    %157 = vmatprep.subr.mxu0 0.0
    %158 = vmatpush1.msra.mxu0 %v99
    %159 = vmatprep.subr.mxu0 0.0
    %160 = vmatpush1.msra.mxu0 %v98
    %161 = vmatprep.subr.mxu0 0.0
    %162 = vmatpush1.msra.mxu0 %v97
    %163 = vmatprep.subr.mxu0 0.0
    %164 = vmatpush1.msra.mxu0 %v96
    %165 = vmatprep.subr.mxu0 0.0
    %166 = vmatpush1.msra.mxu0 %v95
    %167 = vmatprep.subr.mxu0 0.0
    %168 = vmatpush1.msra.mxu0 %v94
    %169 = vmatprep.subr.mxu0 0.0
    %170 = vmatpush2.msra.mxu0 0.0
    %171 = vmatprep.subr.mxu0 0.0
    %172 = vmatpush2.msra.mxu0 0.0
    %173 = vmatprep.subr.mxu0 0.0
    %174 = vmatpush2.msra.mxu0 0.0
    %175 = vmatprep.subr.mxu0 0.0
    %176 = vmatpush2.msra.mxu0 0.0
    %177 = vmatprep.subr.mxu0 0.0
    %178 = vmatpush2.msra.mxu0 0.0
    %179 = vmatprep.subr.mxu0 0.0
    %180 = vmatpush2.msra.mxu0 0.0
    %181 = vmatprep.subr.mxu0 0.0
    %182 = vmatpush2.msra.mxu0 0.0
    %183 = vmatprep.subr.mxu0 0.0
    %184 = vmatpush2.msra.mxu0 0.0
    %185 = vmatprep.subr.mxu0 0.0
    %186 = vmatpush2.msra.mxu0 0.0
    %187 = vmatprep.subr.mxu0 0.0
    %188 = vmatpush2.msra.mxu0 0.0
    %189 = vmatprep.subr.mxu0 0.0
    %190 = vmatpush2.msra.mxu0 0.0
    %191 = vmatprep.subr.mxu0 0.0
    %192 = vmatpush2.msra.mxu0 0.0
    %193 = vmatprep.subr.mxu0 0.0
    %194 = vmatpush2.msra.mxu0 0.0
    %195 = vmatprep.subr.mxu0 0.0
    %196 = vmatpush2.msra.mxu0 0.0
    %197 = vmatprep.subr.mxu0 0.0
    %198 = vmatpush2.msra.mxu0 0.0
    %199 = vmatprep.subr.mxu0 0.0
    %200 = vmatpush2.msra.mxu0 0.0
    %201 = vmatprep.mubr.f32.mxu0 0.0
    %202 = vmatmul.mubr.f32.gmra.mxu0 %v128
    %v203 = vpop.f32.mrf.mxu0
    %v204 = vadd.f32 %v136, %v203
    %v205 = vpop.f32.mrf.mxu0
    %206 = vdwg.mxu0
    %v207 = vtanh.pop %v204
    %v209 = vlaneseq
    %v210 = vshrl.u32 %v209, 7
    %v211 = vsub.s32 0, %v210
    %v212 = vrot.slane %v127, %v211
    %214 = vmatprep.subr.mxu0 0.0
    %215 = vmatpush1.msra.mxu0 %v125
    %216 = vmatprep.subr.mxu0 0.0
    %217 = vmatpush1.msra.mxu0 %v124
    %218 = vmatprep.subr.mxu0 0.0
    %219 = vmatpush1.msra.mxu0 %v123
    %220 = vmatprep.subr.mxu0 0.0
    %221 = vmatpush1.msra.mxu0 %v122
    %222 = vmatprep.subr.mxu0 0.0
    %223 = vmatpush1.msra.mxu0 %v121
    %224 = vmatprep.subr.mxu0 0.0
    %225 = vmatpush1.msra.mxu0 %v120
    %226 = vmatprep.subr.mxu0 0.0
    %227 = vmatpush1.msra.mxu0 %v119
    %228 = vmatprep.subr.mxu0 0.0
    %229 = vmatpush1.msra.mxu0 %v118
    %230 = vmatprep.subr.mxu0 0.0
    %231 = vmatpush1.msra.mxu0 %v117
    %232 = vmatprep.subr.mxu0 0.0
    %233 = vmatpush1.msra.mxu0 %v116
    %234 = vmatprep.subr.mxu0 0.0
    %235 = vmatpush1.msra.mxu0 %v115
    %236 = vmatprep.subr.mxu0 0.0
    %237 = vmatpush1.msra.mxu0 %v114
    %238 = vmatprep.subr.mxu0 0.0
    %239 = vmatpush1.msra.mxu0 %v113
    %240 = vmatprep.subr.mxu0 0.0
    %241 = vmatpush1.msra.mxu0 %v112
    %242 = vmatprep.subr.mxu0 0.0
    %243 = vmatpush1.msra.mxu0 %v111
    %244 = vmatprep.subr.mxu0 0.0
    %245 = vmatpush1.msra.mxu0 %v110
    %246 = vmatprep.subr.mxu0 0.0
    %247 = vmatpush2.msra.mxu0 0.0
    %248 = vmatprep.subr.mxu0 0.0
    %249 = vmatpush2.msra.mxu0 0.0
    %250 = vmatprep.subr.mxu0 0.0
    %251 = vmatpush2.msra.mxu0 0.0
    %252 = vmatprep.subr.mxu0 0.0
    %253 = vmatpush2.msra.mxu0 0.0
    %254 = vmatprep.subr.mxu0 0.0
    %255 = vmatpush2.msra.mxu0 0.0
    %256 = vmatprep.subr.mxu0 0.0
    %257 = vmatpush2.msra.mxu0 0.0
    %258 = vmatprep.subr.mxu0 0.0
    %259 = vmatpush2.msra.mxu0 0.0
    %260 = vmatprep.subr.mxu0 0.0
    %261 = vmatpush2.msra.mxu0 0.0
    %262 = vmatprep.subr.mxu0 0.0
    %263 = vmatpush2.msra.mxu0 0.0
    %264 = vmatprep.subr.mxu0 0.0
    %265 = vmatpush2.msra.mxu0 0.0
    %266 = vmatprep.subr.mxu0 0.0
    %267 = vmatpush2.msra.mxu0 0.0
    %268 = vmatprep.subr.mxu0 0.0
    %269 = vmatpush2.msra.mxu0 0.0
    %270 = vmatprep.subr.mxu0 0.0
    %271 = vmatpush2.msra.mxu0 0.0
    %272 = vmatprep.subr.mxu0 0.0
    %273 = vmatpush2.msra.mxu0 0.0
    %274 = vmatprep.subr.mxu0 0.0
    %275 = vmatpush2.msra.mxu0 0.0
    %276 = vmatprep.subr.mxu0 0.0
    %277 = vmatpush2.msra.mxu0 0.0
    %278 = vmatprep.mubr.f32.mxu0 0.0
    %279 = vmatmul.mubr.f32.gmra.mxu0 %v207
    %v280 = vpop.f32.mrf.mxu0
    %v281 = vadd.f32 %v212, %v280
    %v282 = vpop.f32.mrf.mxu0
    %283 = vdwg.mxu0
    %284 = vmax.xlane.f32.xlu0 %v281
    %v285 = vpop.xlane.xlu0 %284
    %v286 = vsub.f32 %v281, %v285
    %v287 = vmul.f32 %v286, 1.442695
    %v288 = vpow.pop %v287
    %289 = vadd.xlane.f32.xlu0 %v288
    %v290 = vpop.xlane.xlu0 %289
    %v291 = vlog2.pop %v290
    %v292 = vmul.f32 %v291, 0.6931472
    %v293 = vsub.f32 %v286, %v292
    %294 = vst [vmem:[#allocation12] sm:$0xff] %v293
    %s295 = sld [smem:[#allocation2 + $0x1]]
    %s296 = scalar_lea.vmem [#allocation7], %s295
    %v297 = vld [vmem:[%s296] sm:$0x1]
    %v298 = vadd.f32 %v297, %v126
    %v299 = vlaneseq
    %v300 = vshrl.u32 %v299, 7
    %v301 = vsub.s32 0, %v300
    %v302 = vrot.slane %v298, %v301
    %303 = vmatprep.subr.mxu0 0.0
    %304 = vmatpush1.msra.mxu0 %v109
    %305 = vmatprep.subr.mxu0 0.0
    %306 = vmatpush1.msra.mxu0 %v108
    %307 = vmatprep.subr.mxu0 0.0
    %308 = vmatpush1.msra.mxu0 %v107
    %309 = vmatprep.subr.mxu0 0.0
    %310 = vmatpush1.msra.mxu0 %v106
    %311 = vmatprep.subr.mxu0 0.0
    %312 = vmatpush1.msra.mxu0 %v105
    %313 = vmatprep.subr.mxu0 0.0
    %314 = vmatpush1.msra.mxu0 %v104
    %315 = vmatprep.subr.mxu0 0.0
    %316 = vmatpush1.msra.mxu0 %v103
    %317 = vmatprep.subr.mxu0 0.0
    %318 = vmatpush1.msra.mxu0 %v102
    %319 = vmatprep.subr.mxu0 0.0
    %320 = vmatpush1.msra.mxu0 %v101
    %321 = vmatprep.subr.mxu0 0.0
    %322 = vmatpush1.msra.mxu0 %v100
    %323 = vmatprep.subr.mxu0 0.0
    %324 = vmatpush1.msra.mxu0 %v99
    %325 = vmatprep.subr.mxu0 0.0
    %326 = vmatpush1.msra.mxu0 %v98
    %327 = vmatprep.subr.mxu0 0.0
    %328 = vmatpush1.msra.mxu0 %v97
    %329 = vmatprep.subr.mxu0 0.0
    %330 = vmatpush1.msra.mxu0 %v96
    %331 = vmatprep.subr.mxu0 0.0
    %332 = vmatpush1.msra.mxu0 %v95
    %333 = vmatprep.subr.mxu0 0.0
    %334 = vmatpush1.msra.mxu0 %v94
    %335 = vmatprep.subr.mxu0 0.0
    %336 = vmatpush2.msra.mxu0 0.0
    %337 = vmatprep.subr.mxu0 0.0
    %338 = vmatpush2.msra.mxu0 0.0
    %339 = vmatprep.subr.mxu0 0.0
    %340 = vmatpush2.msra.mxu0 0.0
    %341 = vmatprep.subr.mxu0 0.0
    %342 = vmatpush2.msra.mxu0 0.0
    %343 = vmatprep.subr.mxu0 0.0
    %344 = vmatpush2.msra.mxu0 0.0
    %345 = vmatprep.subr.mxu0 0.0
    %346 = vmatpush2.msra.mxu0 0.0
    %347 = vmatprep.subr.mxu0 0.0
    %348 = vmatpush2.msra.mxu0 0.0
    %349 = vmatprep.subr.mxu0 0.0
    %350 = vmatpush2.msra.mxu0 0.0
    %351 = vmatprep.subr.mxu0 0.0
    %352 = vmatpush2.msra.mxu0 0.0
    %353 = vmatprep.subr.mxu0 0.0
    %354 = vmatpush2.msra.mxu0 0.0
    %355 = vmatprep.subr.mxu0 0.0
    %356 = vmatpush2.msra.mxu0 0.0
    %357 = vmatprep.subr.mxu0 0.0
    %358 = vmatpush2.msra.mxu0 0.0
    %359 = vmatprep.subr.mxu0 0.0
    %360 = vmatpush2.msra.mxu0 0.0
    %361 = vmatprep.subr.mxu0 0.0
    %362 = vmatpush2.msra.mxu0 0.0
    %363 = vmatprep.subr.mxu0 0.0
    %364 = vmatpush2.msra.mxu0 0.0
    %365 = vmatprep.subr.mxu0 0.0
    %366 = vmatpush2.msra.mxu0 0.0
    %367 = vmatprep.mubr.f32.mxu0 0.0
    %368 = vmatmul.mubr.f32.gmra.mxu0 %v207
    %v369 = vpop.f32.mrf.mxu0
    %v370 = vadd.f32 %v302, %v369
    %v371 = vpop.f32.mrf.mxu0
    %372 = vdwg.mxu0
    %v373 = vtanh.pop %v370
    %374 = vmatprep.subr.mxu0 0.0
    %375 = vmatpush1.msra.mxu0 %v125
    %376 = vmatprep.subr.mxu0 0.0
    %377 = vmatpush1.msra.mxu0 %v124
    %378 = vmatprep.subr.mxu0 0.0
    %379 = vmatpush1.msra.mxu0 %v123
    %380 = vmatprep.subr.mxu0 0.0
    %381 = vmatpush1.msra.mxu0 %v122
    %382 = vmatprep.subr.mxu0 0.0
    %383 = vmatpush1.msra.mxu0 %v121
    %384 = vmatprep.subr.mxu0 0.0
    %385 = vmatpush1.msra.mxu0 %v120
    %386 = vmatprep.subr.mxu0 0.0
    %387 = vmatpush1.msra.mxu0 %v119
    %388 = vmatprep.subr.mxu0 0.0
    %389 = vmatpush1.msra.mxu0 %v118
    %390 = vmatprep.subr.mxu0 0.0
    %391 = vmatpush1.msra.mxu0 %v117
    %392 = vmatprep.subr.mxu0 0.0
    %393 = vmatpush1.msra.mxu0 %v116
    %394 = vmatprep.subr.mxu0 0.0
    %395 = vmatpush1.msra.mxu0 %v115
    %396 = vmatprep.subr.mxu0 0.0
    %397 = vmatpush1.msra.mxu0 %v114
    %398 = vmatprep.subr.mxu0 0.0
    %399 = vmatpush1.msra.mxu0 %v113
    %400 = vmatprep.subr.mxu0 0.0
    %401 = vmatpush1.msra.mxu0 %v112
    %402 = vmatprep.subr.mxu0 0.0
    %403 = vmatpush1.msra.mxu0 %v111
    %404 = vmatprep.subr.mxu0 0.0
    %405 = vmatpush1.msra.mxu0 %v110
    %406 = vmatprep.subr.mxu0 0.0
    %407 = vmatpush2.msra.mxu0 0.0
    %408 = vmatprep.subr.mxu0 0.0
    %409 = vmatpush2.msra.mxu0 0.0
    %410 = vmatprep.subr.mxu0 0.0
    %411 = vmatpush2.msra.mxu0 0.0
    %412 = vmatprep.subr.mxu0 0.0
    %413 = vmatpush2.msra.mxu0 0.0
    %414 = vmatprep.subr.mxu0 0.0
    %415 = vmatpush2.msra.mxu0 0.0
    %416 = vmatprep.subr.mxu0 0.0
    %417 = vmatpush2.msra.mxu0 0.0
    %418 = vmatprep.subr.mxu0 0.0
    %419 = vmatpush2.msra.mxu0 0.0
    %420 = vmatprep.subr.mxu0 0.0
    %421 = vmatpush2.msra.mxu0 0.0
    %422 = vmatprep.subr.mxu0 0.0
    %423 = vmatpush2.msra.mxu0 0.0
    %424 = vmatprep.subr.mxu0 0.0
    %425 = vmatpush2.msra.mxu0 0.0
    %426 = vmatprep.subr.mxu0 0.0
    %427 = vmatpush2.msra.mxu0 0.0
    %428 = vmatprep.subr.mxu0 0.0
    %429 = vmatpush2.msra.mxu0 0.0
    %430 = vmatprep.subr.mxu0 0.0
    %431 = vmatpush2.msra.mxu0 0.0
    %432 = vmatprep.subr.mxu0 0.0
    %433 = vmatpush2.msra.mxu0 0.0
    %434 = vmatprep.subr.mxu0 0.0
    %435 = vmatpush2.msra.mxu0 0.0
    %436 = vmatprep.subr.mxu0 0.0
    %437 = vmatpush2.msra.mxu0 0.0
    %438 = vmatprep.mubr.f32.mxu0 0.0
    %439 = vmatmul.mubr.f32.gmra.mxu0 %v373
    %v440 = vpop.f32.mrf.mxu0
    %v441 = vadd.f32 %v212, %v440
    %v442 = vpop.f32.mrf.mxu0
    %443 = vdwg.mxu0
    %444 = vmax.xlane.f32.xlu0 %v441
    %v445 = vpop.xlane.xlu0 %444
    %v446 = vsub.f32 %v441, %v445
    %v447 = vmul.f32 %v446, 1.442695
    %v448 = vpow.pop %v447
    %449 = vadd.xlane.f32.xlu0 %v448
    %v450 = vpop.xlane.xlu0 %449
    %v451 = vlog2.pop %v450
    %v452 = vmul.f32 %v451, 0.6931472
    %v453 = vsub.f32 %v446, %v452
    %s454 = scalar_lea.vmem [#allocation12], 8
    %455 = vst [vmem:[%s454] sm:$0xff] %v453
    %s456 = sld [smem:[#allocation2 + $0x2]]
    %s457 = scalar_lea.vmem [#allocation7], %s456
    %v458 = vld [vmem:[%s457] sm:$0x1]
    %v459 = vadd.f32 %v458, %v126
    %v460 = vlaneseq
    %v461 = vshrl.u32 %v460, 7
    %v462 = vsub.s32 0, %v461
    %v463 = vrot.slane %v459, %v462
    %464 = vmatprep.subr.mxu0 0.0
    %465 = vmatpush1.msra.mxu0 %v109
    %466 = vmatprep.subr.mxu0 0.0
    %467 = vmatpush1.msra.mxu0 %v108
    %468 = vmatprep.subr.mxu0 0.0
    %469 = vmatpush1.msra.mxu0 %v107
    %470 = vmatprep.subr.mxu0 0.0
    %471 = vmatpush1.msra.mxu0 %v106
    %472 = vmatprep.subr.mxu0 0.0
    %473 = vmatpush1.msra.mxu0 %v105
    %474 = vmatprep.subr.mxu0 0.0
    %475 = vmatpush1.msra.mxu0 %v104
    %476 = vmatprep.subr.mxu0 0.0
    %477 = vmatpush1.msra.mxu0 %v103
    %478 = vmatprep.subr.mxu0 0.0
    %479 = vmatpush1.msra.mxu0 %v102
    %480 = vmatprep.subr.mxu0 0.0
    %481 = vmatpush1.msra.mxu0 %v101
    %482 = vmatprep.subr.mxu0 0.0
    %483 = vmatpush1.msra.mxu0 %v100
    %484 = vmatprep.subr.mxu0 0.0
    %485 = vmatpush1.msra.mxu0 %v99
    %486 = vmatprep.subr.mxu0 0.0
    %487 = vmatpush1.msra.mxu0 %v98
    %488 = vmatprep.subr.mxu0 0.0
    %489 = vmatpush1.msra.mxu0 %v97
    %490 = vmatprep.subr.mxu0 0.0
    %491 = vmatpush1.msra.mxu0 %v96
    %492 = vmatprep.subr.mxu0 0.0
    %493 = vmatpush1.msra.mxu0 %v95
    %494 = vmatprep.subr.mxu0 0.0
    %495 = vmatpush1.msra.mxu0 %v94
    %496 = vmatprep.subr.mxu0 0.0
    %497 = vmatpush2.msra.mxu0 0.0
    %498 = vmatprep.subr.mxu0 0.0
    %499 = vmatpush2.msra.mxu0 0.0
    %500 = vmatprep.subr.mxu0 0.0
    %501 = vmatpush2.msra.mxu0 0.0
    %502 = vmatprep.subr.mxu0 0.0
    %503 = vmatpush2.msra.mxu0 0.0
    %504 = vmatprep.subr.mxu0 0.0
    %505 = vmatpush2.msra.mxu0 0.0
    %506 = vmatprep.subr.mxu0 0.0
    %507 = vmatpush2.msra.mxu0 0.0
    %508 = vmatprep.subr.mxu0 0.0
    %509 = vmatpush2.msra.mxu0 0.0
    %510 = vmatprep.subr.mxu0 0.0
    %511 = vmatpush2.msra.mxu0 0.0
    %512 = vmatprep.subr.mxu0 0.0
    %513 = vmatpush2.msra.mxu0 0.0
    %514 = vmatprep.subr.mxu0 0.0
    %515 = vmatpush2.msra.mxu0 0.0
    %516 = vmatprep.subr.mxu0 0.0
    %517 = vmatpush2.msra.mxu0 0.0
    %518 = vmatprep.subr.mxu0 0.0
    %519 = vmatpush2.msra.mxu0 0.0
    %520 = vmatprep.subr.mxu0 0.0
    %521 = vmatpush2.msra.mxu0 0.0
    %522 = vmatprep.subr.mxu0 0.0
    %523 = vmatpush2.msra.mxu0 0.0
    %524 = vmatprep.subr.mxu0 0.0
    %525 = vmatpush2.msra.mxu0 0.0
    %526 = vmatprep.subr.mxu0 0.0
    %527 = vmatpush2.msra.mxu0 0.0
    %528 = vmatprep.mubr.f32.mxu0 0.0
    %529 = vmatmul.mubr.f32.gmra.mxu0 %v373
    %v530 = vpop.f32.mrf.mxu0
    %v531 = vadd.f32 %v463, %v530
    %v532 = vpop.f32.mrf.mxu0
    %533 = vdwg.mxu0
    %v534 = vtanh.pop %v531
    %535 = vmatprep.subr.mxu0 0.0
    %536 = vmatpush1.msra.mxu0 %v125
    %537 = vmatprep.subr.mxu0 0.0
    %538 = vmatpush1.msra.mxu0 %v124
    %539 = vmatprep.subr.mxu0 0.0
    %540 = vmatpush1.msra.mxu0 %v123
    %541 = vmatprep.subr.mxu0 0.0
    %542 = vmatpush1.msra.mxu0 %v122
    %543 = vmatprep.subr.mxu0 0.0
    %544 = vmatpush1.msra.mxu0 %v121
    %545 = vmatprep.subr.mxu0 0.0
    %546 = vmatpush1.msra.mxu0 %v120
    %547 = vmatprep.subr.mxu0 0.0
    %548 = vmatpush1.msra.mxu0 %v119
    %549 = vmatprep.subr.mxu0 0.0
    %550 = vmatpush1.msra.mxu0 %v118
    %551 = vmatprep.subr.mxu0 0.0
    %552 = vmatpush1.msra.mxu0 %v117
    %553 = vmatprep.subr.mxu0 0.0
    %554 = vmatpush1.msra.mxu0 %v116
    %555 = vmatprep.subr.mxu0 0.0
    %556 = vmatpush1.msra.mxu0 %v115
    %557 = vmatprep.subr.mxu0 0.0
    %558 = vmatpush1.msra.mxu0 %v114
    %559 = vmatprep.subr.mxu0 0.0
    %560 = vmatpush1.msra.mxu0 %v113
    %561 = vmatprep.subr.mxu0 0.0
    %562 = vmatpush1.msra.mxu0 %v112
    %563 = vmatprep.subr.mxu0 0.0
    %564 = vmatpush1.msra.mxu0 %v111
    %565 = vmatprep.subr.mxu0 0.0
    %566 = vmatpush1.msra.mxu0 %v110
    %567 = vmatprep.subr.mxu0 0.0
    %568 = vmatpush2.msra.mxu0 0.0
    %569 = vmatprep.subr.mxu0 0.0
    %570 = vmatpush2.msra.mxu0 0.0
    %571 = vmatprep.subr.mxu0 0.0
    %572 = vmatpush2.msra.mxu0 0.0
    %573 = vmatprep.subr.mxu0 0.0
    %574 = vmatpush2.msra.mxu0 0.0
    %575 = vmatprep.subr.mxu0 0.0
    %576 = vmatpush2.msra.mxu0 0.0
    %577 = vmatprep.subr.mxu0 0.0
    %578 = vmatpush2.msra.mxu0 0.0
    %579 = vmatprep.subr.mxu0 0.0
    %580 = vmatpush2.msra.mxu0 0.0
    %581 = vmatprep.subr.mxu0 0.0
    %582 = vmatpush2.msra.mxu0 0.0
    %583 = vmatprep.subr.mxu0 0.0
    %584 = vmatpush2.msra.mxu0 0.0
    %585 = vmatprep.subr.mxu0 0.0
    %586 = vmatpush2.msra.mxu0 0.0
    %587 = vmatprep.subr.mxu0 0.0
    %588 = vmatpush2.msra.mxu0 0.0
    %589 = vmatprep.subr.mxu0 0.0
    %590 = vmatpush2.msra.mxu0 0.0
    %591 = vmatprep.subr.mxu0 0.0
    %592 = vmatpush2.msra.mxu0 0.0
    %593 = vmatprep.subr.mxu0 0.0
    %594 = vmatpush2.msra.mxu0 0.0
    %595 = vmatprep.subr.mxu0 0.0
    %596 = vmatpush2.msra.mxu0 0.0
    %597 = vmatprep.subr.mxu0 0.0
    %598 = vmatpush2.msra.mxu0 0.0
    %599 = vmatprep.mubr.f32.mxu0 0.0
    %600 = vmatmul.mubr.f32.gmra.mxu0 %v534
    %v601 = vpop.f32.mrf.mxu0
    %v602 = vadd.f32 %v212, %v601
    %v603 = vpop.f32.mrf.mxu0
    %604 = vdwg.mxu0
    %605 = vmax.xlane.f32.xlu0 %v602
    %v606 = vpop.xlane.xlu0 %605
    %v607 = vsub.f32 %v602, %v606
    %v608 = vmul.f32 %v607, 1.442695
    %v609 = vpow.pop %v608
    %610 = vadd.xlane.f32.xlu0 %v609
    %v611 = vpop.xlane.xlu0 %610
    %v612 = vlog2.pop %v611
    %v613 = vmul.f32 %v612, 0.6931472
    %v614 = vsub.f32 %v607, %v613
    %s615 = scalar_lea.vmem [#allocation12], 16
    %616 = vst [vmem:[%s615] sm:$0xff] %v614
    %s617 = sld [smem:[#allocation2 + $0x3]]
    %s618 = scalar_lea.vmem [#allocation7], %s617
    %v619 = vld [vmem:[%s618] sm:$0x1]
    %v620 = vadd.f32 %v619, %v126
    %v621 = vlaneseq
    %v622 = vshrl.u32 %v621, 7
    %v623 = vsub.s32 0, %v622
    %v624 = vrot.slane %v620, %v623
    %625 = vmatprep.subr.mxu0 0.0
    %626 = vmatpush1.msra.mxu0 %v109
    %627 = vmatprep.subr.mxu0 0.0
    %628 = vmatpush1.msra.mxu0 %v108
    %629 = vmatprep.subr.mxu0 0.0
    %630 = vmatpush1.msra.mxu0 %v107
    %631 = vmatprep.subr.mxu0 0.0
    %632 = vmatpush1.msra.mxu0 %v106
    %633 = vmatprep.subr.mxu0 0.0
    %634 = vmatpush1.msra.mxu0 %v105
    %635 = vmatprep.subr.mxu0 0.0
    %636 = vmatpush1.msra.mxu0 %v104
    %637 = vmatprep.subr.mxu0 0.0
    %638 = vmatpush1.msra.mxu0 %v103
    %639 = vmatprep.subr.mxu0 0.0
    %640 = vmatpush1.msra.mxu0 %v102
    %641 = vmatprep.subr.mxu0 0.0
    %642 = vmatpush1.msra.mxu0 %v101
    %643 = vmatprep.subr.mxu0 0.0
    %644 = vmatpush1.msra.mxu0 %v100
    %645 = vmatprep.subr.mxu0 0.0
    %646 = vmatpush1.msra.mxu0 %v99
    %647 = vmatprep.subr.mxu0 0.0
    %648 = vmatpush1.msra.mxu0 %v98
    %649 = vmatprep.subr.mxu0 0.0
    %650 = vmatpush1.msra.mxu0 %v97
    %651 = vmatprep.subr.mxu0 0.0
    %652 = vmatpush1.msra.mxu0 %v96
    %653 = vmatprep.subr.mxu0 0.0
    %654 = vmatpush1.msra.mxu0 %v95
    %655 = vmatprep.subr.mxu0 0.0
    %656 = vmatpush1.msra.mxu0 %v94
    %657 = vmatprep.subr.mxu0 0.0
    %658 = vmatpush2.msra.mxu0 0.0
    %659 = vmatprep.subr.mxu0 0.0
    %660 = vmatpush2.msra.mxu0 0.0
    %661 = vmatprep.subr.mxu0 0.0
    %662 = vmatpush2.msra.mxu0 0.0
    %663 = vmatprep.subr.mxu0 0.0
    %664 = vmatpush2.msra.mxu0 0.0
    %665 = vmatprep.subr.mxu0 0.0
    %666 = vmatpush2.msra.mxu0 0.0
    %667 = vmatprep.subr.mxu0 0.0
    %668 = vmatpush2.msra.mxu0 0.0
    %669 = vmatprep.subr.mxu0 0.0
    %670 = vmatpush2.msra.mxu0 0.0
    %671 = vmatprep.subr.mxu0 0.0
    %672 = vmatpush2.msra.mxu0 0.0
    %673 = vmatprep.subr.mxu0 0.0
    %674 = vmatpush2.msra.mxu0 0.0
    %675 = vmatprep.subr.mxu0 0.0
    %676 = vmatpush2.msra.mxu0 0.0
    %677 = vmatprep.subr.mxu0 0.0
    %678 = vmatpush2.msra.mxu0 0.0
    %679 = vmatprep.subr.mxu0 0.0
    %680 = vmatpush2.msra.mxu0 0.0
    %681 = vmatprep.subr.mxu0 0.0
    %682 = vmatpush2.msra.mxu0 0.0
    %683 = vmatprep.subr.mxu0 0.0
    %684 = vmatpush2.msra.mxu0 0.0
    %685 = vmatprep.subr.mxu0 0.0
    %686 = vmatpush2.msra.mxu0 0.0
    %687 = vmatprep.subr.mxu0 0.0
    %688 = vmatpush2.msra.mxu0 0.0
    %689 = vmatprep.mubr.f32.mxu0 0.0
    %690 = vmatmul.mubr.f32.gmra.mxu0 %v534
    %v691 = vpop.f32.mrf.mxu0
    %v692 = vadd.f32 %v624, %v691
    %v693 = vpop.f32.mrf.mxu0
    %694 = vdwg.mxu0
    %v695 = vtanh.pop %v692
    %696 = vmatprep.subr.mxu0 0.0
    %697 = vmatpush1.msra.mxu0 %v125
    %698 = vmatprep.subr.mxu0 0.0
    %699 = vmatpush1.msra.mxu0 %v124
    %700 = vmatprep.subr.mxu0 0.0
    %701 = vmatpush1.msra.mxu0 %v123
    %702 = vmatprep.subr.mxu0 0.0
    %703 = vmatpush1.msra.mxu0 %v122
    %704 = vmatprep.subr.mxu0 0.0
    %705 = vmatpush1.msra.mxu0 %v121
    %706 = vmatprep.subr.mxu0 0.0
    %707 = vmatpush1.msra.mxu0 %v120
    %708 = vmatprep.subr.mxu0 0.0
    %709 = vmatpush1.msra.mxu0 %v119
    %710 = vmatprep.subr.mxu0 0.0
    %711 = vmatpush1.msra.mxu0 %v118
    %712 = vmatprep.subr.mxu0 0.0
    %713 = vmatpush1.msra.mxu0 %v117
    %714 = vmatprep.subr.mxu0 0.0
    %715 = vmatpush1.msra.mxu0 %v116
    %716 = vmatprep.subr.mxu0 0.0
    %717 = vmatpush1.msra.mxu0 %v115
    %718 = vmatprep.subr.mxu0 0.0
    %719 = vmatpush1.msra.mxu0 %v114
    %720 = vmatprep.subr.mxu0 0.0
    %721 = vmatpush1.msra.mxu0 %v113
    %722 = vmatprep.subr.mxu0 0.0
    %723 = vmatpush1.msra.mxu0 %v112
    %724 = vmatprep.subr.mxu0 0.0
    %725 = vmatpush1.msra.mxu0 %v111
    %726 = vmatprep.subr.mxu0 0.0
    %727 = vmatpush1.msra.mxu0 %v110
    %728 = vmatprep.subr.mxu0 0.0
    %729 = vmatpush2.msra.mxu0 0.0
    %730 = vmatprep.subr.mxu0 0.0
    %731 = vmatpush2.msra.mxu0 0.0
    %732 = vmatprep.subr.mxu0 0.0
    %733 = vmatpush2.msra.mxu0 0.0
    %734 = vmatprep.subr.mxu0 0.0
    %735 = vmatpush2.msra.mxu0 0.0
    %736 = vmatprep.subr.mxu0 0.0
    %737 = vmatpush2.msra.mxu0 0.0
    %738 = vmatprep.subr.mxu0 0.0
    %739 = vmatpush2.msra.mxu0 0.0
    %740 = vmatprep.subr.mxu0 0.0
    %741 = vmatpush2.msra.mxu0 0.0
    %742 = vmatprep.subr.mxu0 0.0
    %743 = vmatpush2.msra.mxu0 0.0
    %744 = vmatprep.subr.mxu0 0.0
    %745 = vmatpush2.msra.mxu0 0.0
    %746 = vmatprep.subr.mxu0 0.0
    %747 = vmatpush2.msra.mxu0 0.0
    %748 = vmatprep.subr.mxu0 0.0
    %749 = vmatpush2.msra.mxu0 0.0
    %750 = vmatprep.subr.mxu0 0.0
    %751 = vmatpush2.msra.mxu0 0.0
    %752 = vmatprep.subr.mxu0 0.0
    %753 = vmatpush2.msra.mxu0 0.0
    %754 = vmatprep.subr.mxu0 0.0
    %755 = vmatpush2.msra.mxu0 0.0
    %756 = vmatprep.subr.mxu0 0.0
    %757 = vmatpush2.msra.mxu0 0.0
    %758 = vmatprep.subr.mxu0 0.0
    %759 = vmatpush2.msra.mxu0 0.0
    %760 = vmatprep.mubr.f32.mxu0 0.0
    %761 = vmatmul.mubr.f32.gmra.mxu0 %v695
    %v762 = vpop.f32.mrf.mxu0
    %v763 = vadd.f32 %v212, %v762
    %v764 = vpop.f32.mrf.mxu0
    %765 = vdwg.mxu0
    %766 = vmax.xlane.f32.xlu0 %v763
    %v767 = vpop.xlane.xlu0 %766
    %v768 = vsub.f32 %v763, %v767
    %v769 = vmul.f32 %v768, 1.442695
    %v770 = vpow.pop %v769
    %771 = vadd.xlane.f32.xlu0 %v770
    %v772 = vpop.xlane.xlu0 %771
    %v773 = vlog2.pop %v772
    %v774 = vmul.f32 %v773, 0.6931472
    %v775 = vsub.f32 %v768, %v774
    %s776 = scalar_lea.vmem [#allocation12], 24
    %777 = vst [vmem:[%s776] sm:$0xff] %v775
    %s778 = sld [smem:[#allocation2 + $0x4]]
    %s779 = scalar_lea.vmem [#allocation7], %s778
    %v780 = vld [vmem:[%s779] sm:$0x1]
    %v781 = vadd.f32 %v780, %v126
    %v782 = vlaneseq
    %v783 = vshrl.u32 %v782, 7
    %v784 = vsub.s32 0, %v783
    %v785 = vrot.slane %v781, %v784
    %786 = vmatprep.subr.mxu0 0.0
    %787 = vmatpush1.msra.mxu0 %v109
    %788 = vmatprep.subr.mxu0 0.0
    %789 = vmatpush1.msra.mxu0 %v108
    %790 = vmatprep.subr.mxu0 0.0
    %791 = vmatpush1.msra.mxu0 %v107
    %792 = vmatprep.subr.mxu0 0.0
    %793 = vmatpush1.msra.mxu0 %v106
    %794 = vmatprep.subr.mxu0 0.0
    %795 = vmatpush1.msra.mxu0 %v105
    %796 = vmatprep.subr.mxu0 0.0
    %797 = vmatpush1.msra.mxu0 %v104
    %798 = vmatprep.subr.mxu0 0.0
    %799 = vmatpush1.msra.mxu0 %v103
    %800 = vmatprep.subr.mxu0 0.0
    %801 = vmatpush1.msra.mxu0 %v102
    %802 = vmatprep.subr.mxu0 0.0
    %803 = vmatpush1.msra.mxu0 %v101
    %804 = vmatprep.subr.mxu0 0.0
    %805 = vmatpush1.msra.mxu0 %v100
    %806 = vmatprep.subr.mxu0 0.0
    %807 = vmatpush1.msra.mxu0 %v99
    %808 = vmatprep.subr.mxu0 0.0
    %809 = vmatpush1.msra.mxu0 %v98
    %810 = vmatprep.subr.mxu0 0.0
    %811 = vmatpush1.msra.mxu0 %v97
    %812 = vmatprep.subr.mxu0 0.0
    %813 = vmatpush1.msra.mxu0 %v96
    %814 = vmatprep.subr.mxu0 0.0
    %815 = vmatpush1.msra.mxu0 %v95
    %816 = vmatprep.subr.mxu0 0.0
    %817 = vmatpush1.msra.mxu0 %v94
    %818 = vmatprep.subr.mxu0 0.0
    %819 = vmatpush2.msra.mxu0 0.0
    %820 = vmatprep.subr.mxu0 0.0
    %821 = vmatpush2.msra.mxu0 0.0
    %822 = vmatprep.subr.mxu0 0.0
    %823 = vmatpush2.msra.mxu0 0.0
    %824 = vmatprep.subr.mxu0 0.0
    %825 = vmatpush2.msra.mxu0 0.0
    %826 = vmatprep.subr.mxu0 0.0
    %827 = vmatpush2.msra.mxu0 0.0
    %828 = vmatprep.subr.mxu0 0.0
    %829 = vmatpush2.msra.mxu0 0.0
    %830 = vmatprep.subr.mxu0 0.0
    %831 = vmatpush2.msra.mxu0 0.0
    %832 = vmatprep.subr.mxu0 0.0
    %833 = vmatpush2.msra.mxu0 0.0
    %834 = vmatprep.subr.mxu0 0.0
    %835 = vmatpush2.msra.mxu0 0.0
    %836 = vmatprep.subr.mxu0 0.0
    %837 = vmatpush2.msra.mxu0 0.0
    %838 = vmatprep.subr.mxu0 0.0
    %839 = vmatpush2.msra.mxu0 0.0
    %840 = vmatprep.subr.mxu0 0.0
    %841 = vmatpush2.msra.mxu0 0.0
    %842 = vmatprep.subr.mxu0 0.0
    %843 = vmatpush2.msra.mxu0 0.0
    %844 = vmatprep.subr.mxu0 0.0
    %845 = vmatpush2.msra.mxu0 0.0
    %846 = vmatprep.subr.mxu0 0.0
    %847 = vmatpush2.msra.mxu0 0.0
    %848 = vmatprep.subr.mxu0 0.0
    %849 = vmatpush2.msra.mxu0 0.0
    %850 = vmatprep.mubr.f32.mxu0 0.0
    %851 = vmatmul.mubr.f32.gmra.mxu0 %v695
    %v852 = vpop.f32.mrf.mxu0
    %v853 = vadd.f32 %v785, %v852
    %v854 = vpop.f32.mrf.mxu0
    %855 = vdwg.mxu0
    %v856 = vtanh.pop %v853
    %857 = vmatprep.subr.mxu0 0.0
    %858 = vmatpush1.msra.mxu0 %v125
    %859 = vmatprep.subr.mxu0 0.0
    %860 = vmatpush1.msra.mxu0 %v124
    %861 = vmatprep.subr.mxu0 0.0
    %862 = vmatpush1.msra.mxu0 %v123
    %863 = vmatprep.subr.mxu0 0.0
    %864 = vmatpush1.msra.mxu0 %v122
    %865 = vmatprep.subr.mxu0 0.0
    %866 = vmatpush1.msra.mxu0 %v121
    %867 = vmatprep.subr.mxu0 0.0
    %868 = vmatpush1.msra.mxu0 %v120
    %869 = vmatprep.subr.mxu0 0.0
    %870 = vmatpush1.msra.mxu0 %v119
    %871 = vmatprep.subr.mxu0 0.0
    %872 = vmatpush1.msra.mxu0 %v118
    %873 = vmatprep.subr.mxu0 0.0
    %874 = vmatpush1.msra.mxu0 %v117
    %875 = vmatprep.subr.mxu0 0.0
    %876 = vmatpush1.msra.mxu0 %v116
    %877 = vmatprep.subr.mxu0 0.0
    %878 = vmatpush1.msra.mxu0 %v115
    %879 = vmatprep.subr.mxu0 0.0
    %880 = vmatpush1.msra.mxu0 %v114
    %881 = vmatprep.subr.mxu0 0.0
    %882 = vmatpush1.msra.mxu0 %v113
    %883 = vmatprep.subr.mxu0 0.0
    %884 = vmatpush1.msra.mxu0 %v112
    %885 = vmatprep.subr.mxu0 0.0
    %886 = vmatpush1.msra.mxu0 %v111
    %887 = vmatprep.subr.mxu0 0.0
    %888 = vmatpush1.msra.mxu0 %v110
    %889 = vmatprep.subr.mxu0 0.0
    %890 = vmatpush2.msra.mxu0 0.0
    %891 = vmatprep.subr.mxu0 0.0
    %892 = vmatpush2.msra.mxu0 0.0
    %893 = vmatprep.subr.mxu0 0.0
    %894 = vmatpush2.msra.mxu0 0.0
    %895 = vmatprep.subr.mxu0 0.0
    %896 = vmatpush2.msra.mxu0 0.0
    %897 = vmatprep.subr.mxu0 0.0
    %898 = vmatpush2.msra.mxu0 0.0
    %899 = vmatprep.subr.mxu0 0.0
    %900 = vmatpush2.msra.mxu0 0.0
    %901 = vmatprep.subr.mxu0 0.0
    %902 = vmatpush2.msra.mxu0 0.0
    %903 = vmatprep.subr.mxu0 0.0
    %904 = vmatpush2.msra.mxu0 0.0
    %905 = vmatprep.subr.mxu0 0.0
    %906 = vmatpush2.msra.mxu0 0.0
    %907 = vmatprep.subr.mxu0 0.0
    %908 = vmatpush2.msra.mxu0 0.0
    %909 = vmatprep.subr.mxu0 0.0
    %910 = vmatpush2.msra.mxu0 0.0
    %911 = vmatprep.subr.mxu0 0.0
    %912 = vmatpush2.msra.mxu0 0.0
    %913 = vmatprep.subr.mxu0 0.0
    %914 = vmatpush2.msra.mxu0 0.0
    %915 = vmatprep.subr.mxu0 0.0
    %916 = vmatpush2.msra.mxu0 0.0
    %917 = vmatprep.subr.mxu0 0.0
    %918 = vmatpush2.msra.mxu0 0.0
    %919 = vmatprep.subr.mxu0 0.0
    %920 = vmatpush2.msra.mxu0 0.0
    %921 = vmatprep.mubr.f32.mxu0 0.0
    %922 = vmatmul.mubr.f32.gmra.mxu0 %v856
    %v923 = vpop.f32.mrf.mxu0
    %v924 = vadd.f32 %v212, %v923
    %v925 = vpop.f32.mrf.mxu0
    %926 = vdwg.mxu0
    %927 = vmax.xlane.f32.xlu0 %v924
    %v928 = vpop.xlane.xlu0 %927
    %v929 = vsub.f32 %v924, %v928
    %v930 = vmul.f32 %v929, 1.442695
    %v931 = vpow.pop %v930
    %932 = vadd.xlane.f32.xlu0 %v931
    %v933 = vpop.xlane.xlu0 %932
    %v934 = vlog2.pop %v933
    %v935 = vmul.f32 %v934, 0.6931472
    %v936 = vsub.f32 %v929, %v935
    %s937 = scalar_lea.vmem [#allocation12], 32
    %938 = vst [vmem:[%s937] sm:$0xff] %v936
    %s939 = sld [smem:[#allocation2 + $0x5]]
    %s940 = scalar_lea.vmem [#allocation7], %s939
    %v941 = vld [vmem:[%s940] sm:$0x1]
    %v942 = vadd.f32 %v941, %v126
    %v943 = vlaneseq
    %v944 = vshrl.u32 %v943, 7
    %v945 = vsub.s32 0, %v944
    %v946 = vrot.slane %v942, %v945
    %947 = vmatprep.subr.mxu0 0.0
    %948 = vmatpush1.msra.mxu0 %v109
    %949 = vmatprep.subr.mxu0 0.0
    %950 = vmatpush1.msra.mxu0 %v108
    %951 = vmatprep.subr.mxu0 0.0
    %952 = vmatpush1.msra.mxu0 %v107
    %953 = vmatprep.subr.mxu0 0.0
    %954 = vmatpush1.msra.mxu0 %v106
    %955 = vmatprep.subr.mxu0 0.0
    %956 = vmatpush1.msra.mxu0 %v105
    %957 = vmatprep.subr.mxu0 0.0
    %958 = vmatpush1.msra.mxu0 %v104
    %959 = vmatprep.subr.mxu0 0.0
    %960 = vmatpush1.msra.mxu0 %v103
    %961 = vmatprep.subr.mxu0 0.0
    %962 = vmatpush1.msra.mxu0 %v102
    %963 = vmatprep.subr.mxu0 0.0
    %964 = vmatpush1.msra.mxu0 %v101
    %965 = vmatprep.subr.mxu0 0.0
    %966 = vmatpush1.msra.mxu0 %v100
    %967 = vmatprep.subr.mxu0 0.0
    %968 = vmatpush1.msra.mxu0 %v99
    %969 = vmatprep.subr.mxu0 0.0
    %970 = vmatpush1.msra.mxu0 %v98
    %971 = vmatprep.subr.mxu0 0.0
    %972 = vmatpush1.msra.mxu0 %v97
    %973 = vmatprep.subr.mxu0 0.0
    %974 = vmatpush1.msra.mxu0 %v96
    %975 = vmatprep.subr.mxu0 0.0
    %976 = vmatpush1.msra.mxu0 %v95
    %977 = vmatprep.subr.mxu0 0.0
    %978 = vmatpush1.msra.mxu0 %v94
    %979 = vmatprep.subr.mxu0 0.0
    %980 = vmatpush2.msra.mxu0 0.0
    %981 = vmatprep.subr.mxu0 0.0
    %982 = vmatpush2.msra.mxu0 0.0
    %983 = vmatprep.subr.mxu0 0.0
    %984 = vmatpush2.msra.mxu0 0.0
    %985 = vmatprep.subr.mxu0 0.0
    %986 = vmatpush2.msra.mxu0 0.0
    %987 = vmatprep.subr.mxu0 0.0
    %988 = vmatpush2.msra.mxu0 0.0
    %989 = vmatprep.subr.mxu0 0.0
    %990 = vmatpush2.msra.mxu0 0.0
    %991 = vmatprep.subr.mxu0 0.0
    %992 = vmatpush2.msra.mxu0 0.0
    %993 = vmatprep.subr.mxu0 0.0
    %994 = vmatpush2.msra.mxu0 0.0
    %995 = vmatprep.subr.mxu0 0.0
    %996 = vmatpush2.msra.mxu0 0.0
    %997 = vmatprep.subr.mxu0 0.0
    %998 = vmatpush2.msra.mxu0 0.0
    %999 = vmatprep.subr.mxu0 0.0
    %1000 = vmatpush2.msra.mxu0 0.0
    %1001 = vmatprep.subr.mxu0 0.0
    %1002 = vmatpush2.msra.mxu0 0.0
    %1003 = vmatprep.subr.mxu0 0.0
    %1004 = vmatpush2.msra.mxu0 0.0
    %1005 = vmatprep.subr.mxu0 0.0
    %1006 = vmatpush2.msra.mxu0 0.0
    %1007 = vmatprep.subr.mxu0 0.0
    %1008 = vmatpush2.msra.mxu0 0.0
    %1009 = vmatprep.subr.mxu0 0.0
    %1010 = vmatpush2.msra.mxu0 0.0
    %1011 = vmatprep.mubr.f32.mxu0 0.0
    %1012 = vmatmul.mubr.f32.gmra.mxu0 %v856
    %v1013 = vpop.f32.mrf.mxu0
    %v1014 = vadd.f32 %v946, %v1013
    %v1015 = vpop.f32.mrf.mxu0
    %1016 = vdwg.mxu0
    %v1017 = vtanh.pop %v1014
    %1018 = vmatprep.subr.mxu0 0.0
    %1019 = vmatpush1.msra.mxu0 %v125
    %1020 = vmatprep.subr.mxu0 0.0
    %1021 = vmatpush1.msra.mxu0 %v124
    %1022 = vmatprep.subr.mxu0 0.0
    %1023 = vmatpush1.msra.mxu0 %v123
    %1024 = vmatprep.subr.mxu0 0.0
    %1025 = vmatpush1.msra.mxu0 %v122
    %1026 = vmatprep.subr.mxu0 0.0
    %1027 = vmatpush1.msra.mxu0 %v121
    %1028 = vmatprep.subr.mxu0 0.0
    %1029 = vmatpush1.msra.mxu0 %v120
    %1030 = vmatprep.subr.mxu0 0.0
    %1031 = vmatpush1.msra.mxu0 %v119
    %1032 = vmatprep.subr.mxu0 0.0
    %1033 = vmatpush1.msra.mxu0 %v118
    %1034 = vmatprep.subr.mxu0 0.0
    %1035 = vmatpush1.msra.mxu0 %v117
    %1036 = vmatprep.subr.mxu0 0.0
    %1037 = vmatpush1.msra.mxu0 %v116
    %1038 = vmatprep.subr.mxu0 0.0
    %1039 = vmatpush1.msra.mxu0 %v115
    %1040 = vmatprep.subr.mxu0 0.0
    %1041 = vmatpush1.msra.mxu0 %v114
    %1042 = vmatprep.subr.mxu0 0.0
    %1043 = vmatpush1.msra.mxu0 %v113
    %1044 = vmatprep.subr.mxu0 0.0
    %1045 = vmatpush1.msra.mxu0 %v112
    %1046 = vmatprep.subr.mxu0 0.0
    %1047 = vmatpush1.msra.mxu0 %v111
    %1048 = vmatprep.subr.mxu0 0.0
    %1049 = vmatpush1.msra.mxu0 %v110
    %1050 = vmatprep.subr.mxu0 0.0
    %1051 = vmatpush2.msra.mxu0 0.0
    %1052 = vmatprep.subr.mxu0 0.0
    %1053 = vmatpush2.msra.mxu0 0.0
    %1054 = vmatprep.subr.mxu0 0.0
    %1055 = vmatpush2.msra.mxu0 0.0
    %1056 = vmatprep.subr.mxu0 0.0
    %1057 = vmatpush2.msra.mxu0 0.0
    %1058 = vmatprep.subr.mxu0 0.0
    %1059 = vmatpush2.msra.mxu0 0.0
    %1060 = vmatprep.subr.mxu0 0.0
    %1061 = vmatpush2.msra.mxu0 0.0
    %1062 = vmatprep.subr.mxu0 0.0
    %1063 = vmatpush2.msra.mxu0 0.0
    %1064 = vmatprep.subr.mxu0 0.0
    %1065 = vmatpush2.msra.mxu0 0.0
    %1066 = vmatprep.subr.mxu0 0.0
    %1067 = vmatpush2.msra.mxu0 0.0
    %1068 = vmatprep.subr.mxu0 0.0
    %1069 = vmatpush2.msra.mxu0 0.0
    %1070 = vmatprep.subr.mxu0 0.0
    %1071 = vmatpush2.msra.mxu0 0.0
    %1072 = vmatprep.subr.mxu0 0.0
    %1073 = vmatpush2.msra.mxu0 0.0
    %1074 = vmatprep.subr.mxu0 0.0
    %1075 = vmatpush2.msra.mxu0 0.0
    %1076 = vmatprep.subr.mxu0 0.0
    %1077 = vmatpush2.msra.mxu0 0.0
    %1078 = vmatprep.subr.mxu0 0.0
    %1079 = vmatpush2.msra.mxu0 0.0
    %1080 = vmatprep.subr.mxu0 0.0
    %1081 = vmatpush2.msra.mxu0 0.0
    %1082 = vmatprep.mubr.f32.mxu0 0.0
    %1083 = vmatmul.mubr.f32.gmra.mxu0 %v1017
    %v1084 = vpop.f32.mrf.mxu0
    %v1085 = vadd.f32 %v212, %v1084
    %v1086 = vpop.f32.mrf.mxu0
    %1087 = vdwg.mxu0
    %1088 = vmax.xlane.f32.xlu0 %v1085
    %v1089 = vpop.xlane.xlu0 %1088
    %v1090 = vsub.f32 %v1085, %v1089
    %v1091 = vmul.f32 %v1090, 1.442695
    %v1092 = vpow.pop %v1091
    %1093 = vadd.xlane.f32.xlu0 %v1092
    %v1094 = vpop.xlane.xlu0 %1093
    %v1095 = vlog2.pop %v1094
    %v1096 = vmul.f32 %v1095, 0.6931472
    %v1097 = vsub.f32 %v1090, %v1096
    %s1098 = scalar_lea.vmem [#allocation12], 40
    %1099 = vst [vmem:[%s1098] sm:$0xff] %v1097
    %s1100 = sld [smem:[#allocation2 + $0x6]]
    %s1101 = scalar_lea.vmem [#allocation7], %s1100
    %v1102 = vld [vmem:[%s1101] sm:$0x1]
    %v1103 = vadd.f32 %v1102, %v126
    %v1104 = vlaneseq
    %v1105 = vshrl.u32 %v1104, 7
    %v1106 = vsub.s32 0, %v1105
    %v1107 = vrot.slane %v1103, %v1106
    %1108 = vmatprep.subr.mxu0 0.0
    %1109 = vmatpush1.msra.mxu0 %v109
    %1110 = vmatprep.subr.mxu0 0.0
    %1111 = vmatpush1.msra.mxu0 %v108
    %1112 = vmatprep.subr.mxu0 0.0
    %1113 = vmatpush1.msra.mxu0 %v107
    %1114 = vmatprep.subr.mxu0 0.0
    %1115 = vmatpush1.msra.mxu0 %v106
    %1116 = vmatprep.subr.mxu0 0.0
    %1117 = vmatpush1.msra.mxu0 %v105
    %1118 = vmatprep.subr.mxu0 0.0
    %1119 = vmatpush1.msra.mxu0 %v104
    %1120 = vmatprep.subr.mxu0 0.0
    %1121 = vmatpush1.msra.mxu0 %v103
    %1122 = vmatprep.subr.mxu0 0.0
    %1123 = vmatpush1.msra.mxu0 %v102
    %1124 = vmatprep.subr.mxu0 0.0
    %1125 = vmatpush1.msra.mxu0 %v101
    %1126 = vmatprep.subr.mxu0 0.0
    %1127 = vmatpush1.msra.mxu0 %v100
    %1128 = vmatprep.subr.mxu0 0.0
    %1129 = vmatpush1.msra.mxu0 %v99
    %1130 = vmatprep.subr.mxu0 0.0
    %1131 = vmatpush1.msra.mxu0 %v98
    %1132 = vmatprep.subr.mxu0 0.0
    %1133 = vmatpush1.msra.mxu0 %v97
    %1134 = vmatprep.subr.mxu0 0.0
    %1135 = vmatpush1.msra.mxu0 %v96
    %1136 = vmatprep.subr.mxu0 0.0
    %1137 = vmatpush1.msra.mxu0 %v95
    %1138 = vmatprep.subr.mxu0 0.0
    %1139 = vmatpush1.msra.mxu0 %v94
    %1140 = vmatprep.subr.mxu0 0.0
    %1141 = vmatpush2.msra.mxu0 0.0
    %1142 = vmatprep.subr.mxu0 0.0
    %1143 = vmatpush2.msra.mxu0 0.0
    %1144 = vmatprep.subr.mxu0 0.0
    %1145 = vmatpush2.msra.mxu0 0.0
    %1146 = vmatprep.subr.mxu0 0.0
    %1147 = vmatpush2.msra.mxu0 0.0
    %1148 = vmatprep.subr.mxu0 0.0
    %1149 = vmatpush2.msra.mxu0 0.0
    %1150 = vmatprep.subr.mxu0 0.0
    %1151 = vmatpush2.msra.mxu0 0.0
    %1152 = vmatprep.subr.mxu0 0.0
    %1153 = vmatpush2.msra.mxu0 0.0
    %1154 = vmatprep.subr.mxu0 0.0
    %1155 = vmatpush2.msra.mxu0 0.0
    %1156 = vmatprep.subr.mxu0 0.0
    %1157 = vmatpush2.msra.mxu0 0.0
    %1158 = vmatprep.subr.mxu0 0.0
    %1159 = vmatpush2.msra.mxu0 0.0
    %1160 = vmatprep.subr.mxu0 0.0
    %1161 = vmatpush2.msra.mxu0 0.0
    %1162 = vmatprep.subr.mxu0 0.0
    %1163 = vmatpush2.msra.mxu0 0.0
    %1164 = vmatprep.subr.mxu0 0.0
    %1165 = vmatpush2.msra.mxu0 0.0
    %1166 = vmatprep.subr.mxu0 0.0
    %1167 = vmatpush2.msra.mxu0 0.0
    %1168 = vmatprep.subr.mxu0 0.0
    %1169 = vmatpush2.msra.mxu0 0.0
    %1170 = vmatprep.subr.mxu0 0.0
    %1171 = vmatpush2.msra.mxu0 0.0
    %1172 = vmatprep.mubr.f32.mxu0 0.0
    %1173 = vmatmul.mubr.f32.gmra.mxu0 %v1017
    %v1174 = vpop.f32.mrf.mxu0
    %v1175 = vadd.f32 %v1107, %v1174
    %v1176 = vpop.f32.mrf.mxu0
    %1177 = vdwg.mxu0
    %v1178 = vtanh.pop %v1175
    %1179 = vmatprep.subr.mxu0 0.0
    %1180 = vmatpush1.msra.mxu0 %v125
    %1181 = vmatprep.subr.mxu0 0.0
    %1182 = vmatpush1.msra.mxu0 %v124
    %1183 = vmatprep.subr.mxu0 0.0
    %1184 = vmatpush1.msra.mxu0 %v123
    %1185 = vmatprep.subr.mxu0 0.0
    %1186 = vmatpush1.msra.mxu0 %v122
    %1187 = vmatprep.subr.mxu0 0.0
    %1188 = vmatpush1.msra.mxu0 %v121
    %1189 = vmatprep.subr.mxu0 0.0
    %1190 = vmatpush1.msra.mxu0 %v120
    %1191 = vmatprep.subr.mxu0 0.0
    %1192 = vmatpush1.msra.mxu0 %v119
    %1193 = vmatprep.subr.mxu0 0.0
    %1194 = vmatpush1.msra.mxu0 %v118
    %1195 = vmatprep.subr.mxu0 0.0
    %1196 = vmatpush1.msra.mxu0 %v117
    %1197 = vmatprep.subr.mxu0 0.0
    %1198 = vmatpush1.msra.mxu0 %v116
    %1199 = vmatprep.subr.mxu0 0.0
    %1200 = vmatpush1.msra.mxu0 %v115
    %1201 = vmatprep.subr.mxu0 0.0
    %1202 = vmatpush1.msra.mxu0 %v114
    %1203 = vmatprep.subr.mxu0 0.0
    %1204 = vmatpush1.msra.mxu0 %v113
    %1205 = vmatprep.subr.mxu0 0.0
    %1206 = vmatpush1.msra.mxu0 %v112
    %1207 = vmatprep.subr.mxu0 0.0
    %1208 = vmatpush1.msra.mxu0 %v111
    %1209 = vmatprep.subr.mxu0 0.0
    %1210 = vmatpush1.msra.mxu0 %v110
    %1211 = vmatprep.subr.mxu0 0.0
    %1212 = vmatpush2.msra.mxu0 0.0
    %1213 = vmatprep.subr.mxu0 0.0
    %1214 = vmatpush2.msra.mxu0 0.0
    %1215 = vmatprep.subr.mxu0 0.0
    %1216 = vmatpush2.msra.mxu0 0.0
    %1217 = vmatprep.subr.mxu0 0.0
    %1218 = vmatpush2.msra.mxu0 0.0
    %1219 = vmatprep.subr.mxu0 0.0
    %1220 = vmatpush2.msra.mxu0 0.0
    %1221 = vmatprep.subr.mxu0 0.0
    %1222 = vmatpush2.msra.mxu0 0.0
    %1223 = vmatprep.subr.mxu0 0.0
    %1224 = vmatpush2.msra.mxu0 0.0
    %1225 = vmatprep.subr.mxu0 0.0
    %1226 = vmatpush2.msra.mxu0 0.0
    %1227 = vmatprep.subr.mxu0 0.0
    %1228 = vmatpush2.msra.mxu0 0.0
    %1229 = vmatprep.subr.mxu0 0.0
    %1230 = vmatpush2.msra.mxu0 0.0
    %1231 = vmatprep.subr.mxu0 0.0
    %1232 = vmatpush2.msra.mxu0 0.0
    %1233 = vmatprep.subr.mxu0 0.0
    %1234 = vmatpush2.msra.mxu0 0.0
    %1235 = vmatprep.subr.mxu0 0.0
    %1236 = vmatpush2.msra.mxu0 0.0
    %1237 = vmatprep.subr.mxu0 0.0
    %1238 = vmatpush2.msra.mxu0 0.0
    %1239 = vmatprep.subr.mxu0 0.0
    %1240 = vmatpush2.msra.mxu0 0.0
    %1241 = vmatprep.subr.mxu0 0.0
    %1242 = vmatpush2.msra.mxu0 0.0
    %1243 = vmatprep.mubr.f32.mxu0 0.0
    %1244 = vmatmul.mubr.f32.gmra.mxu0 %v1178
    %v1245 = vpop.f32.mrf.mxu0
    %v1246 = vadd.f32 %v212, %v1245
    %v1247 = vpop.f32.mrf.mxu0
    %1248 = vdwg.mxu0
    %1249 = vmax.xlane.f32.xlu0 %v1246
    %v1250 = vpop.xlane.xlu0 %1249
    %v1251 = vsub.f32 %v1246, %v1250
    %v1252 = vmul.f32 %v1251, 1.442695
    %v1253 = vpow.pop %v1252
    %1254 = vadd.xlane.f32.xlu0 %v1253
    %v1255 = vpop.xlane.xlu0 %1254
    %v1256 = vlog2.pop %v1255
    %v1257 = vmul.f32 %v1256, 0.6931472
    %v1258 = vsub.f32 %v1251, %v1257
    %s1259 = scalar_lea.vmem [#allocation12], 48
    %1260 = vst [vmem:[%s1259] sm:$0xff] %v1258
    %s1261 = sld [smem:[#allocation2 + $0x7]]
    %s1262 = scalar_lea.vmem [#allocation7], %s1261
    %v1263 = vld [vmem:[%s1262] sm:$0x1]
    %v1264 = vadd.f32 %v1263, %v126
    %v1265 = vlaneseq
    %v1266 = vshrl.u32 %v1265, 7
    %v1267 = vsub.s32 0, %v1266
    %v1268 = vrot.slane %v1264, %v1267
    %1269 = vmatprep.subr.mxu0 0.0
    %1270 = vmatpush1.msra.mxu0 %v109
    %1271 = vmatprep.subr.mxu0 0.0
    %1272 = vmatpush1.msra.mxu0 %v108
    %1273 = vmatprep.subr.mxu0 0.0
    %1274 = vmatpush1.msra.mxu0 %v107
    %1275 = vmatprep.subr.mxu0 0.0
    %1276 = vmatpush1.msra.mxu0 %v106
    %1277 = vmatprep.subr.mxu0 0.0
    %1278 = vmatpush1.msra.mxu0 %v105
    %1279 = vmatprep.subr.mxu0 0.0
    %1280 = vmatpush1.msra.mxu0 %v104
    %1281 = vmatprep.subr.mxu0 0.0
    %1282 = vmatpush1.msra.mxu0 %v103
    %1283 = vmatprep.subr.mxu0 0.0
    %1284 = vmatpush1.msra.mxu0 %v102
    %1285 = vmatprep.subr.mxu0 0.0
    %1286 = vmatpush1.msra.mxu0 %v101
    %1287 = vmatprep.subr.mxu0 0.0
    %1288 = vmatpush1.msra.mxu0 %v100
    %1289 = vmatprep.subr.mxu0 0.0
    %1290 = vmatpush1.msra.mxu0 %v99
    %1291 = vmatprep.subr.mxu0 0.0
    %1292 = vmatpush1.msra.mxu0 %v98
    %1293 = vmatprep.subr.mxu0 0.0
    %1294 = vmatpush1.msra.mxu0 %v97
    %1295 = vmatprep.subr.mxu0 0.0
    %1296 = vmatpush1.msra.mxu0 %v96
    %1297 = vmatprep.subr.mxu0 0.0
    %1298 = vmatpush1.msra.mxu0 %v95
    %1299 = vmatprep.subr.mxu0 0.0
    %1300 = vmatpush1.msra.mxu0 %v94
    %1301 = vmatprep.subr.mxu0 0.0
    %1302 = vmatpush2.msra.mxu0 0.0
    %1303 = vmatprep.subr.mxu0 0.0
    %1304 = vmatpush2.msra.mxu0 0.0
    %1305 = vmatprep.subr.mxu0 0.0
    %1306 = vmatpush2.msra.mxu0 0.0
    %1307 = vmatprep.subr.mxu0 0.0
    %1308 = vmatpush2.msra.mxu0 0.0
    %1309 = vmatprep.subr.mxu0 0.0
    %1310 = vmatpush2.msra.mxu0 0.0
    %1311 = vmatprep.subr.mxu0 0.0
    %1312 = vmatpush2.msra.mxu0 0.0
    %1313 = vmatprep.subr.mxu0 0.0
    %1314 = vmatpush2.msra.mxu0 0.0
    %1315 = vmatprep.subr.mxu0 0.0
    %1316 = vmatpush2.msra.mxu0 0.0
    %1317 = vmatprep.subr.mxu0 0.0
    %1318 = vmatpush2.msra.mxu0 0.0
    %1319 = vmatprep.subr.mxu0 0.0
    %1320 = vmatpush2.msra.mxu0 0.0
    %1321 = vmatprep.subr.mxu0 0.0
    %1322 = vmatpush2.msra.mxu0 0.0
    %1323 = vmatprep.subr.mxu0 0.0
    %1324 = vmatpush2.msra.mxu0 0.0
    %1325 = vmatprep.subr.mxu0 0.0
    %1326 = vmatpush2.msra.mxu0 0.0
    %1327 = vmatprep.subr.mxu0 0.0
    %1328 = vmatpush2.msra.mxu0 0.0
    %1329 = vmatprep.subr.mxu0 0.0
    %1330 = vmatpush2.msra.mxu0 0.0
    %1331 = vmatprep.subr.mxu0 0.0
    %1332 = vmatpush2.msra.mxu0 0.0
    %1333 = vmatprep.mubr.f32.mxu0 0.0
    %1334 = vmatmul.mubr.f32.gmra.mxu0 %v1178
    %v1335 = vpop.f32.mrf.mxu0
    %v1336 = vadd.f32 %v1268, %v1335
    %v1337 = vpop.f32.mrf.mxu0
    %1338 = vdwg.mxu0
    %v1339 = vtanh.pop %v1336
    %1340 = vmatprep.subr.mxu0 0.0
    %1341 = vmatpush1.msra.mxu0 %v125
    %1342 = vmatprep.subr.mxu0 0.0
    %1343 = vmatpush1.msra.mxu0 %v124
    %1344 = vmatprep.subr.mxu0 0.0
    %1345 = vmatpush1.msra.mxu0 %v123
    %1346 = vmatprep.subr.mxu0 0.0
    %1347 = vmatpush1.msra.mxu0 %v122
    %1348 = vmatprep.subr.mxu0 0.0
    %1349 = vmatpush1.msra.mxu0 %v121
    %1350 = vmatprep.subr.mxu0 0.0
    %1351 = vmatpush1.msra.mxu0 %v120
    %1352 = vmatprep.subr.mxu0 0.0
    %1353 = vmatpush1.msra.mxu0 %v119
    %1354 = vmatprep.subr.mxu0 0.0
    %1355 = vmatpush1.msra.mxu0 %v118
    %1356 = vmatprep.subr.mxu0 0.0
    %1357 = vmatpush1.msra.mxu0 %v117
    %1358 = vmatprep.subr.mxu0 0.0
    %1359 = vmatpush1.msra.mxu0 %v116
    %1360 = vmatprep.subr.mxu0 0.0
    %1361 = vmatpush1.msra.mxu0 %v115
    %1362 = vmatprep.subr.mxu0 0.0
    %1363 = vmatpush1.msra.mxu0 %v114
    %1364 = vmatprep.subr.mxu0 0.0
    %1365 = vmatpush1.msra.mxu0 %v113
    %1366 = vmatprep.subr.mxu0 0.0
    %1367 = vmatpush1.msra.mxu0 %v112
    %1368 = vmatprep.subr.mxu0 0.0
    %1369 = vmatpush1.msra.mxu0 %v111
    %1370 = vmatprep.subr.mxu0 0.0
    %1371 = vmatpush1.msra.mxu0 %v110
    %1372 = vmatprep.subr.mxu0 0.0
    %1373 = vmatpush2.msra.mxu0 0.0
    %1374 = vmatprep.subr.mxu0 0.0
    %1375 = vmatpush2.msra.mxu0 0.0
    %1376 = vmatprep.subr.mxu0 0.0
    %1377 = vmatpush2.msra.mxu0 0.0
    %1378 = vmatprep.subr.mxu0 0.0
    %1379 = vmatpush2.msra.mxu0 0.0
    %1380 = vmatprep.subr.mxu0 0.0
    %1381 = vmatpush2.msra.mxu0 0.0
    %1382 = vmatprep.subr.mxu0 0.0
    %1383 = vmatpush2.msra.mxu0 0.0
    %1384 = vmatprep.subr.mxu0 0.0
    %1385 = vmatpush2.msra.mxu0 0.0
    %1386 = vmatprep.subr.mxu0 0.0
    %1387 = vmatpush2.msra.mxu0 0.0
    %1388 = vmatprep.subr.mxu0 0.0
    %1389 = vmatpush2.msra.mxu0 0.0
    %1390 = vmatprep.subr.mxu0 0.0
    %1391 = vmatpush2.msra.mxu0 0.0
    %1392 = vmatprep.subr.mxu0 0.0
    %1393 = vmatpush2.msra.mxu0 0.0
    %1394 = vmatprep.subr.mxu0 0.0
    %1395 = vmatpush2.msra.mxu0 0.0
    %1396 = vmatprep.subr.mxu0 0.0
    %1397 = vmatpush2.msra.mxu0 0.0
    %1398 = vmatprep.subr.mxu0 0.0
    %1399 = vmatpush2.msra.mxu0 0.0
    %1400 = vmatprep.subr.mxu0 0.0
    %1401 = vmatpush2.msra.mxu0 0.0
    %1402 = vmatprep.subr.mxu0 0.0
    %1403 = vmatpush2.msra.mxu0 0.0
    %1404 = vmatprep.mubr.f32.mxu0 0.0
    %1405 = vmatmul.mubr.f32.gmra.mxu0 %v1339
    %v1406 = vpop.f32.mrf.mxu0
    %v1407 = vadd.f32 %v212, %v1406
    %v1408 = vpop.f32.mrf.mxu0
    %1409 = vdwg.mxu0
    %1410 = vmax.xlane.f32.xlu0 %v1407
    %v1411 = vpop.xlane.xlu0 %1410
    %v1412 = vsub.f32 %v1407, %v1411
    %v1413 = vmul.f32 %v1412, 1.442695
    %v1414 = vpow.pop %v1413
    %1415 = vadd.xlane.f32.xlu0 %v1414
    %v1416 = vpop.xlane.xlu0 %1415
    %v1417 = vlog2.pop %v1416
    %v1418 = vmul.f32 %v1417, 0.6931472
    %v1419 = vsub.f32 %v1412, %v1418
    %s1420 = scalar_lea.vmem [#allocation12], 56
    %1421 = vst [vmem:[%s1420] sm:$0xff] %v1419
    %1422 = vst [vmem:[#allocation13] sm:$0xff] %v1339
    // Predicated region
    $region50: #{tpu_custom_call.1} parent=1 // pred_check
      _
    $region51: #{tpu_custom_call.1} parent=1 // pred_check_branch
      %1424 = sbr.rel (0) target = $region53
    $region52: #{tpu_custom_call.1} parent=1 // pred_region
      %s1426 = ssub.s32 1024, 1024
      %1427 = vsyncadd [#allocation4], %s1426
      %s1428 = sshll.u32 [#allocation12], 4
      %s1429 = int_to_ptr.vmem [resolvable:$true] %s1428
      %1434 = dma.vmem_to_hbm [thread:$0]  %s1429, 1024, %s7, [#allocation4], 128, 128, 8
    $region53: #{tpu_custom_call.1} parent=1 // pred_fallthru
      _
    // Predicated region
    $region54: #{tpu_custom_call.1} parent=1 // pred_check
      _
    $region55: #{tpu_custom_call.1} parent=1 // pred_check_branch
      %1436 = sbr.rel (0) target = $region57
    $region56: #{tpu_custom_call.1} parent=1 // pred_region
      %s1438 = ssub.s32 128, 128
      %1439 = vsyncadd [#allocation14], %s1438
      %s1441 = sshll.u32 [#allocation13], 4
      %s1442 = int_to_ptr.vmem [resolvable:$true] %s1441
      %1444 = dma.vmem_to_hbm [thread:$0]  %s1442, 128, %s8, [#allocation14]
    $region57: #{tpu_custom_call.1} parent=1 // pred_fallthru
      _
    // Predicated region
    $region58: #{tpu_custom_call.1} parent=1 // pred_check
      _
    $region59: #{tpu_custom_call.1} parent=1 // pred_check_branch
      %1446 = sbr.rel (0) target = $region61
    $region60: #{tpu_custom_call.1} parent=1 // pred_region
      %1447 = dma.done [#allocation4], 1024
    $region61: #{tpu_custom_call.1} parent=1 // pred_fallthru
      _
    // Predicated region
    $region62: #{tpu_custom_call.1} parent=1 // pred_check
      _
    $region63: #{tpu_custom_call.1} parent=1 // pred_check_branch
      %1449 = sbr.rel (0) target = $region65
    $region64: #{tpu_custom_call.1} parent=1 // pred_region
      %1450 = dma.done [#allocation14], 128
    $region65: #{tpu_custom_call.1} parent=1 // pred_fallthru
      _
    %1451 = vsyncpa [#allocation3], 1
    %1452 = vsyncpa [#allocation8], 1
    %1453 = vsyncpa [#allocation11], 1
    %1454 = vsyncpa [#allocation4], 1
    %1455 = vsyncpa [#allocation14], 1
    %1456 = vsyncpa [#allocation5], 1

</llo_original>
